<compile_context>
chip_gen: v7x
topology: tpu7x:2x2x1
jax: 0.10.0
libtpu: 0.0.40
codegen_flags: <defaults>
</compile_context>

<pallas_src>
import functools

import jax
import jax.numpy as jnp
from jax import lax
from jax.experimental import pallas as pl
from jax.experimental.pallas import tpu as pltpu


LEAKY_SLOPE = 0.1
BN_EPS = 1e-5


def _leaky(x):
    # max(x, 0.1*x) == LeakyReLU(0.1) for slope in (0, 1); avoids cmp+select.
    return jnp.maximum(x, LEAKY_SLOPE * x)


# ---------------------------------------------------------------------------
# Fused MultiResBlock kernel.  Grid = (batch, res_block); one ResBlock per step,
# downsample folded into the first step of each batch element.
# ---------------------------------------------------------------------------

def _multires_kernel(x_ref, wds_ref, bds_ref, w1_ref, b1_ref, w2_ref, b2_ref,
                     o_ref, x32_vmem, y_vmem, h_vmem,
                     *, Ho, Wo, Cin4, Cout, Cmid):
    """One grid step = one ResBlock (plus downsample on the first block).

    x_ref   : (1, Ho+1, Wo+1, 4*Cin) bf16  s2d input, 1px top/left zero pad
    wds_ref : (4, 4*Cin, Cout)       bf16  downsample weights (2x2 taps, BN folded)
    bds_ref : (1, Cout)              f32   downsample bias (folded BN shift)
    w1_ref  : (1, Cout, Cmid)        bf16  this block's 1x1 weights (streamed)
    b1_ref  : (1, 1, Cmid)           f32
    w2_ref  : (1, 9, Cmid, Cout)     bf16  this block's 3x3 weights (streamed)
    b2_ref  : (1, 1, Cout)           f32
    o_ref   : (1, Ho, Wo, Cout)      bf16
    x32_vmem: VMEM (Ho+1, Wo+1, 4*Cin) f32  staged input (aligned bf16 load+cast)
    y_vmem  : VMEM (Ho*Wo, Cout)       f32  resident activation / residual (f32 chain)
    h_vmem  : VMEM (Ho+2, Wo+2, Cmid)  f32  zero-haloed 1x1 output feeding the 3x3
    """
    blk = pl.program_id(1)

    @pl.when(blk == 0)
    def _downsample():
        # Stage the bf16 input once per batch element (aligned full-block access);
        # shifted tap reads below then use the proven f32 sublane-offset path.
        x32_vmem[...] = x_ref[0].astype(jnp.float32)

        # Zero ONLY the 1-px halo border of the conv2 scratch (interior is fully
        # overwritten every block).  Re-done per batch element so the kernel is
        # correct under megacore sharding of the parallel batch axis.
        zrow = jnp.zeros((1, Wo + 2, Cmid), jnp.float32)
        zcol = jnp.zeros((Ho + 2, 1, Cmid), jnp.float32)
        h_vmem[pl.ds(0, 1), :, :] = zrow
        h_vmem[pl.ds(Ho + 1, 1), :, :] = zrow
        h_vmem[:, pl.ds(0, 1), :] = zcol
        h_vmem[:, pl.ds(Wo + 1, 1), :] = zcol

        # 3x3 stride-2 conv == 2x2 stride-1 conv over space-to-depth channels.
        acc = jnp.zeros((Ho * Wo, Cout), jnp.float32)
        for t in range(4):
            dy, dx = t // 2, t % 2
            patch = x32_vmem[pl.ds(dy, Ho), pl.ds(dx, Wo), :]        # (Ho, Wo, 4*Cin)
            lhs = patch.reshape(Ho * Wo, Cin4).astype(jnp.bfloat16)
            acc = acc + jnp.dot(lhs, wds_ref[t],
                                preferred_element_type=jnp.float32)
        y_vmem[...] = _leaky(acc + bds_ref[...])

    # ---- one ResBlock per grid step (weights streamed per block) -------------
    # conv1: 1x1, Cout -> Cmid
    h = jnp.dot(y_vmem[...].astype(jnp.bfloat16), w1_ref[0],
                preferred_element_type=jnp.float32)
    h = _leaky(h + b1_ref[0])                                        # (Ho*Wo, Cmid)
    h_vmem[pl.ds(1, Ho), pl.ds(1, Wo), :] = h.reshape(Ho, Wo, Cmid)

    # conv2: 3x3 pad 1 as 9 shifted MXU matmuls, Cmid -> Cout
    acc = jnp.zeros((Ho * Wo, Cout), jnp.float32)
    for t in range(9):
        ky, kx = t // 3, t % 3
        patch = h_vmem[pl.ds(ky, Ho), pl.ds(kx, Wo), :]              # (Ho, Wo, Cmid)
        lhs = patch.reshape(Ho * Wo, Cmid).astype(jnp.bfloat16)
        acc = acc + jnp.dot(lhs, w2_ref[0, t],
                            preferred_element_type=jnp.float32)
    z = _leaky(acc + b2_ref[0])
    y_vmem[...] = y_vmem[...] + z                                    # residual (f32)

    @pl.when(blk == pl.num_programs(1) - 1)
    def _writeback():
        o_ref[...] = y_vmem[...].reshape(1, Ho, Wo, Cout).astype(o_ref.dtype)


# ---------------------------------------------------------------------------
# Wrapper-side layout transforms and weight preparation.
# ---------------------------------------------------------------------------

def _space_to_depth_pad_bf16(x_nchw):
    """(N,C,H,W) f32 -> (N,H/2,W/2,4C) bf16 s2d view, 1px zero pad top/left.

    One fused transpose/reshape/pad/cast chain straight from NCHW (no separate
    NHWC transpose pass); channel order is (py, px, c) to match the weights.
    """
    N, C, H, W = x_nchw.shape
    Ho, Wo = H // 2, W // 2
    xs = (x_nchw.reshape(N, C, Ho, 2, Wo, 2)
          .transpose(0, 2, 4, 3, 5, 1)                  # (N, Ho, Wo, py, px, C)
          .reshape(N, Ho, Wo, 4 * C)
          .astype(jnp.bfloat16))
    return jnp.pad(xs, ((0, 0), (1, 0), (1, 0), (0, 0)))


def _s2d_downsample_weight(w):
    """(3,3,Cin,Cout) HWIO (BN-folded) -> (4, 4*Cin, Cout) for the 2x2 s2d conv.

    Tap (dy,dx) over s2d channel (py,px,ci) maps to original tap ky=2*dy+py-1,
    kx=2*dx+px-1 (zero if outside the 3x3 range).
    """
    Cin, Cout = w.shape[2], w.shape[3]
    wz = jnp.pad(w, ((1, 0), (1, 0), (0, 0), (0, 0)))   # wz[a,b] = w[a-1,b-1] (or 0)
    taps = []
    for dy in range(2):
        for dx in range(2):
            blockw = wz[2 * dy:2 * dy + 2, 2 * dx:2 * dx + 2]   # [py, px, ci, co]
            taps.append(blockw.reshape(4 * Cin, Cout))
    return jnp.stack(taps, axis=0)


def _vmem_limit_bytes(block_bytes, scratch_bytes):
    """Per-generation VMEM limit derived from actual block/scratch sizes."""
    try:
        phys = pltpu.get_tpu_info().vmem_capacity_bytes
    except Exception:
        phys = 64 * 1024 * 1024                      # conservative (v7x per-TC)
    need = 2 * block_bytes + scratch_bytes           # double-buffered blocks + scratch
    need = int(need * 1.25) + (8 << 20)              # headroom for compiler temporaries
    return max(32 << 20, min(need, int(phys * 0.85)))


def multires_forward_pallas(params, x_nchw):
    N, Cin, H, W = x_nchw.shape
    assert H % 2 == 0 and W % 2 == 0, "spatial dims must be even for the stride-2 conv"
    Ho, Wo = H // 2, W // 2

    ds = params["downsample"]
    Cout = ds["w"].shape[-1]
    Cmid = Cout // 2
    Cin4 = 4 * Cin
    blocks = params["res_blocks"]
    B = len(blocks)
    assert B >= 1

    # Fold BN scale into the weights offline; ship matmul weights as bf16.
    w_ds = _s2d_downsample_weight(ds["w"] * ds["scale"]).astype(jnp.bfloat16)
    b_ds = ds["bias"].astype(jnp.float32)                           # (1, Cout)
    w1_all = jnp.stack([(b["conv1"]["w"] * b["conv1"]["scale"]).reshape(Cout, Cmid)
                        for b in blocks]).astype(jnp.bfloat16)      # (B, Cout, Cmid)
    b1_all = jnp.stack([b["conv1"]["bias"] for b in blocks]).astype(jnp.float32)
    w2_all = jnp.stack([(b["conv2"]["w"] * b["conv2"]["scale"]).reshape(9, Cmid, Cout)
                        for b in blocks]).astype(jnp.bfloat16)      # (B, 9, Cmid, Cout)
    b2_all = jnp.stack([b["conv2"]["bias"] for b in blocks]).astype(jnp.float32)

    x_s2d = _space_to_depth_pad_bf16(x_nchw)                        # (N,Ho+1,Wo+1,4Cin) bf16

    kernel = functools.partial(_multires_kernel, Ho=Ho, Wo=Wo, Cin4=Cin4,
                               Cout=Cout, Cmid=Cmid)

    # Per-step VMEM block bytes (for the generation-aware limit).
    block_bytes = ((Ho + 1) * (Wo + 1) * Cin4 * 2          # x block (bf16)
                   + 4 * Cin4 * Cout * 2 + Cout * 4        # downsample w/b
                   + Cout * Cmid * 2 + Cmid * 4            # conv1 w/b (one block)
                   + 9 * Cmid * Cout * 2 + Cout * 4        # conv2 w/b (one block)
                   + Ho * Wo * Cout * 2)                   # out block (bf16)
    scratch_bytes = ((Ho + 1) * (Wo + 1) * Cin4             # staged f32 input
                     + Ho * Wo * Cout                       # y
                     + (Ho + 2) * (Wo + 2) * Cmid) * 4      # haloed h
    scratch_bytes += 6 * Ho * Wo * Cout * 4                  # acc/h/z temporaries

    out = pl.pallas_call(
        kernel,
        out_shape=jax.ShapeDtypeStruct((N, Ho, Wo, Cout), jnp.bfloat16),
        grid=(N, B),
        in_specs=[
            pl.BlockSpec((1, Ho + 1, Wo + 1, Cin4), lambda n, b: (n, 0, 0, 0)),
            pl.BlockSpec((4, Cin4, Cout), lambda n, b: (0, 0, 0)),
            pl.BlockSpec((1, Cout), lambda n, b: (0, 0)),
            pl.BlockSpec((1, Cout, Cmid), lambda n, b: (b, 0, 0)),       # streamed
            pl.BlockSpec((1, 1, Cmid), lambda n, b: (b, 0, 0)),          # streamed
            pl.BlockSpec((1, 9, Cmid, Cout), lambda n, b: (b, 0, 0, 0)), # streamed
            pl.BlockSpec((1, 1, Cout), lambda n, b: (b, 0, 0)),          # streamed
        ],
        out_specs=pl.BlockSpec((1, Ho, Wo, Cout), lambda n, b: (n, 0, 0, 0)),
        scratch_shapes=[
            pltpu.VMEM((Ho + 1, Wo + 1, Cin4), jnp.float32),   # staged f32 input
            pltpu.VMEM((Ho * Wo, Cout), jnp.float32),          # resident activation y
            pltpu.VMEM((Ho + 2, Wo + 2, Cmid), jnp.float32),   # zero-haloed 1x1 output
        ],
        compiler_params=pltpu.CompilerParams(
            dimension_semantics=("parallel", "arbitrary"),
            vmem_limit_bytes=_vmem_limit_bytes(block_bytes, scratch_bytes),
        ),
    )(x_s2d, w_ds, b_ds, w1_all, b1_all, w2_all, b2_all)

    return jnp.transpose(out, (0, 3, 1, 2))                         # NHWC -> NCHW (bf16)


# ---------------------------------------------------------------------------
# Parameter construction (deterministic, synthetic — no checkpoint load).
# ---------------------------------------------------------------------------

def _fold_bn(gamma, beta, mean, var):
    scale = gamma / jnp.sqrt(var + BN_EPS)
    bias = beta - mean * scale
    return scale[None, :], bias[None, :]          # (1, Cout)


def _make_conv_block_params(key, k, cin, cout):
    kw, kg, kb, km, kv = jax.random.split(key, 5)
    w = 0.1 * jax.random.normal(kw, (k, k, cin, cout), jnp.float32)   # HWIO
    gamma = 1.0 + 0.1 * jax.random.normal(kg, (cout,), jnp.float32)
    beta = 0.1 * jax.random.normal(kb, (cout,), jnp.float32)
    mean = 0.1 * jax.random.normal(km, (cout,), jnp.float32)
    var = 0.5 + 0.1 * jnp.abs(jax.random.normal(kv, (cout,), jnp.float32))
    scale, bias = _fold_bn(gamma, beta, mean, var)
    return {"w": w, "scale": scale, "bias": bias}


def make_multires_params(key, block_count, out_channel):
    in_channel = out_channel // 2
    keys = jax.random.split(key, 1 + 2 * block_count)
    params = {"downsample": _make_conv_block_params(keys[0], 3, in_channel, out_channel),
              "res_blocks": []}
    for i in range(block_count):
        conv1 = _make_conv_block_params(keys[1 + 2 * i], 1, out_channel, out_channel // 2)
        conv2 = _make_conv_block_params(keys[2 + 2 * i], 3, out_channel // 2, out_channel)
        params["res_blocks"].append({"conv1": conv1, "conv2": conv2})
    return params


# ---------------------------------------------------------------------------
# Pure-JAX reference (mirrors the PyTorch forward).
# ---------------------------------------------------------------------------

def _ref_conv_block(x_nhwc, p, stride, pad):
    y = lax.conv_general_dilated(
        x_nhwc, p["w"], (stride, stride), [(pad, pad), (pad, pad)],
        dimension_numbers=("NHWC", "HWIO", "NHWC"))
    y = y * p["scale"][None, None] + p["bias"][None, None]
    return jnp.where(y > 0, y, LEAKY_SLOPE * y)


def multires_forward_ref(params, x_nchw):
    x = jnp.transpose(x_nchw, (0, 2, 3, 1))
    y = _ref_conv_block(x, params["downsample"], 2, 1)
    for blk in params["res_blocks"]:
        residual = y
        h = _ref_conv_block(y, blk["conv1"], 1, 0)
        h = _ref_conv_block(h, blk["conv2"], 1, 1)
        y = h + residual
    return jnp.transpose(y, (0, 3, 1, 2))


if __name__ == "__main__":
    key = jax.random.PRNGKey(0)
    k_param, k_x = jax.random.split(key)

    block_count = 2
    out_channel = 8                                 # in_channel = out_channel // 2 = 4
    N, H, W = 2, 16, 16

    params = make_multires_params(k_param, block_count, out_channel)
    x = jax.random.normal(k_x, (N, out_channel // 2, H, W), jnp.float32)   # NCHW input

    out = jax.block_until_ready(multires_forward_pallas(params, x))
    ref = multires_forward_ref(params, x)

    assert out.shape == (N, out_channel, H // 2, W // 2), out.shape
    out_f32 = out.astype(jnp.float32)
    # bf16 input/weights/output vs. the all-f32 reference: allow a few-percent tolerance.
    assert jnp.allclose(out_f32, ref, rtol=5e-2, atol=5e-2), \
        f"max abs err = {jnp.max(jnp.abs(out_f32 - ref))}"
    print("KERNEL_OK")
</pallas_src>

<mosaic_0001>
module attributes {stable_mosaic.version = 11 : i64} {
  func.func @_multires_kernel(%arg0: i32, %arg1: i32, %arg2: memref<1x9x9x16xbf16, #tpu.memory_space<vmem>>, %arg3: memref<4x16x8xbf16, #tpu.memory_space<vmem>>, %arg4: memref<1x8xf32, #tpu.memory_space<vmem>>, %arg5: memref<1x8x4xbf16, #tpu.memory_space<vmem>>, %arg6: memref<1x1x4xf32, #tpu.memory_space<vmem>>, %arg7: memref<1x9x4x8xbf16, #tpu.memory_space<vmem>>, %arg8: memref<1x1x8xf32, #tpu.memory_space<vmem>>, %arg9: memref<1x8x8x8xbf16, #tpu.memory_space<vmem>>, %arg10: memref<9x9x16xf32, #tpu.memory_space<vmem>>, %arg11: memref<64x8xf32, #tpu.memory_space<vmem>>, %arg12: memref<10x10x4xf32, #tpu.memory_space<vmem>>) attributes {dimension_semantics = [#tpu.dimension_semantics<parallel>, #tpu.dimension_semantics<arbitrary>], iteration_bounds = array<i64: 2, 2>, scalar_prefetch = 0 : i64, scratch_operands = 3 : i64, tpu.core_type = #tpu.core_type<tc>, window_params = [{transform_indices = @transform_0, window_bounds = array<i64: 1, 9, 9, 16>}, {pipeline_mode = #tpu.pipeline_mode<synchronous>, transform_indices = @transform_1, window_bounds = array<i64: 4, 16, 8>}, {pipeline_mode = #tpu.pipeline_mode<synchronous>, transform_indices = @transform_2, window_bounds = array<i64: 1, 8>}, {transform_indices = @transform_3, window_bounds = array<i64: 1, 8, 4>}, {transform_indices = @transform_4, window_bounds = array<i64: 1, 1, 4>}, {transform_indices = @transform_5, window_bounds = array<i64: 1, 9, 4, 8>}, {transform_indices = @transform_6, window_bounds = array<i64: 1, 1, 8>}, {transform_indices = @transform_7, window_bounds = array<i64: 1, 8, 8, 8>}]} {
    %c0_i32 = arith.constant 0 : i32
    %0 = arith.cmpi eq, %arg1, %c0_i32 : i32
    %1 = arith.extui %0 : i1 to i32
    %c0_i32_0 = arith.constant 0 : i32
    %2 = arith.cmpi ne, %1, %c0_i32_0 : i32
    scf.if %2 {
      %c0_86 = arith.constant 0 : index
      %c0_87 = arith.constant 0 : index
      %c0_88 = arith.constant 0 : index
      %c0_89 = arith.constant 0 : index
      %94 = vector.load %arg2[%c0_86, %c0_87, %c0_88, %c0_89] : memref<1x9x9x16xbf16, #tpu.memory_space<vmem>>, vector<1x9x9x16xbf16>
      %95 = vector.shape_cast %94 : vector<1x9x9x16xbf16> to vector<9x9x16xbf16>
      %96 = arith.extf %95 : vector<9x9x16xbf16> to vector<9x9x16xf32>
      %c0_90 = arith.constant 0 : index
      %c0_91 = arith.constant 0 : index
      %c0_92 = arith.constant 0 : index
      %97 = vector.load %arg10[%c0_90, %c0_91, %c0_92] : memref<9x9x16xf32, #tpu.memory_space<vmem>>, vector<9x9x16xf32>
      tpu.vector_store %arg10[%c0_90, %c0_91, %c0_92], %96 {strides = array<i32>} : memref<9x9x16xf32, #tpu.memory_space<vmem>>, vector<9x9x16xf32>,
      %cst_93 = arith.constant 0.000000e+00 : f32
      %98 = vector.broadcast %cst_93 : f32 to vector<1x10x4xf32>
      %cst_94 = arith.constant 0.000000e+00 : f32
      %99 = vector.broadcast %cst_94 : f32 to vector<10x1x4xf32>
      %c0_95 = arith.constant 0 : index
      %c0_96 = arith.constant 0 : index
      %c0_97 = arith.constant 0 : index
      %100 = vector.load %arg12[%c0_95, %c0_96, %c0_97] : memref<10x10x4xf32, #tpu.memory_space<vmem>>, vector<1x10x4xf32>
      tpu.vector_store %arg12[%c0_95, %c0_96, %c0_97], %98 {strides = array<i32>} : memref<10x10x4xf32, #tpu.memory_space<vmem>>, vector<1x10x4xf32>,
      %c9 = arith.constant 9 : index
      %c0_98 = arith.constant 0 : index
      %c0_99 = arith.constant 0 : index
      %101 = vector.load %arg12[%c9, %c0_98, %c0_99] : memref<10x10x4xf32, #tpu.memory_space<vmem>>, vector<1x10x4xf32>
      tpu.vector_store %arg12[%c9, %c0_98, %c0_99], %98 {strides = array<i32>} : memref<10x10x4xf32, #tpu.memory_space<vmem>>, vector<1x10x4xf32>,
      %c0_100 = arith.constant 0 : index
      %c0_101 = arith.constant 0 : index
      %c0_102 = arith.constant 0 : index
      %102 = vector.load %arg12[%c0_100, %c0_101, %c0_102] : memref<10x10x4xf32, #tpu.memory_space<vmem>>, vector<10x1x4xf32>
      tpu.vector_store %arg12[%c0_100, %c0_101, %c0_102], %99 {strides = array<i32>} : memref<10x10x4xf32, #tpu.memory_space<vmem>>, vector<10x1x4xf32>,
      %c0_103 = arith.constant 0 : index
      %c9_104 = arith.constant 9 : index
      %c0_105 = arith.constant 0 : index
      %103 = vector.load %arg12[%c0_103, %c9_104, %c0_105] : memref<10x10x4xf32, #tpu.memory_space<vmem>>, vector<10x1x4xf32>
      tpu.vector_store %arg12[%c0_103, %c9_104, %c0_105], %99 {strides = array<i32>} : memref<10x10x4xf32, #tpu.memory_space<vmem>>, vector<10x1x4xf32>,
      %cst_106 = arith.constant 0.000000e+00 : f32
      %104 = vector.broadcast %cst_106 : f32 to vector<64x8xf32>
      %c0_107 = arith.constant 0 : index
      %c0_108 = arith.constant 0 : index
      %c0_109 = arith.constant 0 : index
      %105 = vector.load %arg10[%c0_107, %c0_108, %c0_109] : memref<9x9x16xf32, #tpu.memory_space<vmem>>, vector<8x8x16xf32>
      %106 = vector.shape_cast %105 : vector<8x8x16xf32> to vector<64x16xf32>
      %107 = arith.truncf %106 : vector<64x16xf32> to vector<64x16xbf16>
      %c0_110 = arith.constant 0 : index
      %c0_111 = arith.constant 0 : index
      %c0_112 = arith.constant 0 : index
      %108 = vector.load %arg3[%c0_110, %c0_111, %c0_112] : memref<4x16x8xbf16, #tpu.memory_space<vmem>>, vector<1x16x8xbf16>
      %109 = vector.shape_cast %108 : vector<1x16x8xbf16> to vector<16x8xbf16>
      %cst_113 = arith.constant dense<0.000000e+00> : vector<64x8xf32>
      %110 = tpu.matmul %107, %109, %cst_113 {dimension_numbers = #tpu.dot_dimension_numbers<[1], [0], [0], [1], [0, 0, 1, 1], [], []>} : vector<64x16xbf16>, vector<16x8xbf16>, vector<64x8xf32> -> vector<64x8xf32>
      %111 = arith.addf %104, %110 : vector<64x8xf32>
      %c0_114 = arith.constant 0 : index
      %c1_115 = arith.constant 1 : index
      %c0_116 = arith.constant 0 : index
      %112 = vector.load %arg10[%c0_114, %c1_115, %c0_116] : memref<9x9x16xf32, #tpu.memory_space<vmem>>, vector<8x8x16xf32>
      %113 = vector.shape_cast %112 : vector<8x8x16xf32> to vector<64x16xf32>
      %114 = arith.truncf %113 : vector<64x16xf32> to vector<64x16xbf16>
      %c1_117 = arith.constant 1 : index
      %c0_118 = arith.constant 0 : index
      %c0_119 = arith.constant 0 : index
      %115 = vector.load %arg3[%c1_117, %c0_118, %c0_119] : memref<4x16x8xbf16, #tpu.memory_space<vmem>>, vector<1x16x8xbf16>
      %116 = vector.shape_cast %115 : vector<1x16x8xbf16> to vector<16x8xbf16>
      %cst_120 = arith.constant dense<0.000000e+00> : vector<64x8xf32>
      %117 = tpu.matmul %114, %116, %cst_120 {dimension_numbers = #tpu.dot_dimension_numbers<[1], [0], [0], [1], [0, 0, 1, 1], [], []>} : vector<64x16xbf16>, vector<16x8xbf16>, vector<64x8xf32> -> vector<64x8xf32>
      %118 = arith.addf %111, %117 : vector<64x8xf32>
      %c1_121 = arith.constant 1 : index
      %c0_122 = arith.constant 0 : index
      %c0_123 = arith.constant 0 : index
      %119 = vector.load %arg10[%c1_121, %c0_122, %c0_123] : memref<9x9x16xf32, #tpu.memory_space<vmem>>, vector<8x8x16xf32>
      %120 = vector.shape_cast %119 : vector<8x8x16xf32> to vector<64x16xf32>
      %121 = arith.truncf %120 : vector<64x16xf32> to vector<64x16xbf16>
      %c2_124 = arith.constant 2 : index
      %c0_125 = arith.constant 0 : index
      %c0_126 = arith.constant 0 : index
      %122 = vector.load %arg3[%c2_124, %c0_125, %c0_126] : memref<4x16x8xbf16, #tpu.memory_space<vmem>>, vector<1x16x8xbf16>
      %123 = vector.shape_cast %122 : vector<1x16x8xbf16> to vector<16x8xbf16>
      %cst_127 = arith.constant dense<0.000000e+00> : vector<64x8xf32>
      %124 = tpu.matmul %121, %123, %cst_127 {dimension_numbers = #tpu.dot_dimension_numbers<[1], [0], [0], [1], [0, 0, 1, 1], [], []>} : vector<64x16xbf16>, vector<16x8xbf16>, vector<64x8xf32> -> vector<64x8xf32>
      %125 = arith.addf %118, %124 : vector<64x8xf32>
      %c1_128 = arith.constant 1 : index
      %c1_129 = arith.constant 1 : index
      %c0_130 = arith.constant 0 : index
      %126 = vector.load %arg10[%c1_128, %c1_129, %c0_130] : memref<9x9x16xf32, #tpu.memory_space<vmem>>, vector<8x8x16xf32>
      %127 = vector.shape_cast %126 : vector<8x8x16xf32> to vector<64x16xf32>
      %128 = arith.truncf %127 : vector<64x16xf32> to vector<64x16xbf16>
      %c3_131 = arith.constant 3 : index
      %c0_132 = arith.constant 0 : index
      %c0_133 = arith.constant 0 : index
      %129 = vector.load %arg3[%c3_131, %c0_132, %c0_133] : memref<4x16x8xbf16, #tpu.memory_space<vmem>>, vector<1x16x8xbf16>
      %130 = vector.shape_cast %129 : vector<1x16x8xbf16> to vector<16x8xbf16>
      %cst_134 = arith.constant dense<0.000000e+00> : vector<64x8xf32>
      %131 = tpu.matmul %128, %130, %cst_134 {dimension_numbers = #tpu.dot_dimension_numbers<[1], [0], [0], [1], [0, 0, 1, 1], [], []>} : vector<64x16xbf16>, vector<16x8xbf16>, vector<64x8xf32> -> vector<64x8xf32>
      %132 = arith.addf %125, %131 : vector<64x8xf32>
      %c0_135 = arith.constant 0 : index
      %c0_136 = arith.constant 0 : index
      %133 = vector.load %arg4[%c0_135, %c0_136] : memref<1x8xf32, #tpu.memory_space<vmem>>, vector<1x8xf32>
      %134 = vector.broadcast %133 : vector<1x8xf32> to vector<64x8xf32>
      %135 = arith.addf %132, %134 : vector<64x8xf32>
      %cst_137 = arith.constant 1.000000e-01 : f32
      %136 = vector.broadcast %cst_137 : f32 to vector<64x8xf32>
      %137 = arith.mulf %136, %135 : vector<64x8xf32>
      %138 = arith.maximumf %135, %137 : vector<64x8xf32>
      %c0_138 = arith.constant 0 : index
      %c0_139 = arith.constant 0 : index
      %139 = vector.load %arg11[%c0_138, %c0_139] : memref<64x8xf32, #tpu.memory_space<vmem>>, vector<64x8xf32>
      tpu.vector_store %arg11[%c0_138, %c0_139], %138 {strides = array<i32>} : memref<64x8xf32, #tpu.memory_space<vmem>>, vector<64x8xf32>,
    } else {
    }
    %c0 = arith.constant 0 : index
    %c0_1 = arith.constant 0 : index
    %3 = vector.load %arg11[%c0, %c0_1] : memref<64x8xf32, #tpu.memory_space<vmem>>, vector<64x8xf32>
    %4 = arith.truncf %3 : vector<64x8xf32> to vector<64x8xbf16>
    %c0_2 = arith.constant 0 : index
    %c0_3 = arith.constant 0 : index
    %c0_4 = arith.constant 0 : index
    %5 = vector.load %arg5[%c0_2, %c0_3, %c0_4] : memref<1x8x4xbf16, #tpu.memory_space<vmem>>, vector<1x8x4xbf16>
    %6 = vector.shape_cast %5 : vector<1x8x4xbf16> to vector<8x4xbf16>
    %cst = arith.constant dense<0.000000e+00> : vector<64x4xf32>
    %7 = tpu.matmul %4, %6, %cst {dimension_numbers = #tpu.dot_dimension_numbers<[1], [0], [0], [1], [0, 0, 1, 1], [], []>} : vector<64x8xbf16>, vector<8x4xbf16>, vector<64x4xf32> -> vector<64x4xf32>
    %c0_5 = arith.constant 0 : index
    %c0_6 = arith.constant 0 : index
    %c0_7 = arith.constant 0 : index
    %8 = vector.load %arg6[%c0_5, %c0_6, %c0_7] : memref<1x1x4xf32, #tpu.memory_space<vmem>>, vector<1x1x4xf32>
    %9 = vector.shape_cast %8 : vector<1x1x4xf32> to vector<1x4xf32>
    %10 = vector.broadcast %9 : vector<1x4xf32> to vector<64x4xf32>
    %11 = arith.addf %7, %10 : vector<64x4xf32>
    %cst_8 = arith.constant 1.000000e-01 : f32
    %12 = vector.broadcast %cst_8 : f32 to vector<64x4xf32>
    %13 = arith.mulf %12, %11 : vector<64x4xf32>
    %14 = arith.maximumf %11, %13 : vector<64x4xf32>
    %15 = vector.shape_cast %14 : vector<64x4xf32> to vector<8x8x4xf32>
    %c1 = arith.constant 1 : index
    %c1_9 = arith.constant 1 : index
    %c0_10 = arith.constant 0 : index
    %16 = vector.load %arg12[%c1, %c1_9, %c0_10] : memref<10x10x4xf32, #tpu.memory_space<vmem>>, vector<8x8x4xf32>
    tpu.vector_store %arg12[%c1, %c1_9, %c0_10], %15 {strides = array<i32>} : memref<10x10x4xf32, #tpu.memory_space<vmem>>, vector<8x8x4xf32>,
    %cst_11 = arith.constant 0.000000e+00 : f32
    %17 = vector.broadcast %cst_11 : f32 to vector<64x8xf32>
    %c0_12 = arith.constant 0 : index
    %c0_13 = arith.constant 0 : index
    %c0_14 = arith.constant 0 : index
    %18 = vector.load %arg12[%c0_12, %c0_13, %c0_14] : memref<10x10x4xf32, #tpu.memory_space<vmem>>, vector<8x8x4xf32>
    %19 = vector.shape_cast %18 : vector<8x8x4xf32> to vector<64x4xf32>
    %20 = arith.truncf %19 : vector<64x4xf32> to vector<64x4xbf16>
    %c0_15 = arith.constant 0 : index
    %c0_16 = arith.constant 0 : index
    %c0_17 = arith.constant 0 : index
    %c0_18 = arith.constant 0 : index
    %21 = vector.load %arg7[%c0_15, %c0_16, %c0_17, %c0_18] : memref<1x9x4x8xbf16, #tpu.memory_space<vmem>>, vector<1x1x4x8xbf16>
    %22 = vector.shape_cast %21 : vector<1x1x4x8xbf16> to vector<4x8xbf16>
    %cst_19 = arith.constant dense<0.000000e+00> : vector<64x8xf32>
    %23 = tpu.matmul %20, %22, %cst_19 {dimension_numbers = #tpu.dot_dimension_numbers<[1], [0], [0], [1], [0, 0, 1, 1], [], []>} : vector<64x4xbf16>, vector<4x8xbf16>, vector<64x8xf32> -> vector<64x8xf32>
    %24 = arith.addf %17, %23 : vector<64x8xf32>
    %c0_20 = arith.constant 0 : index
    %c1_21 = arith.constant 1 : index
    %c0_22 = arith.constant 0 : index
    %25 = vector.load %arg12[%c0_20, %c1_21, %c0_22] : memref<10x10x4xf32, #tpu.memory_space<vmem>>, vector<8x8x4xf32>
    %26 = vector.shape_cast %25 : vector<8x8x4xf32> to vector<64x4xf32>
    %27 = arith.truncf %26 : vector<64x4xf32> to vector<64x4xbf16>
    %c0_23 = arith.constant 0 : index
    %c1_24 = arith.constant 1 : index
    %c0_25 = arith.constant 0 : index
    %c0_26 = arith.constant 0 : index
    %28 = vector.load %arg7[%c0_23, %c1_24, %c0_25, %c0_26] : memref<1x9x4x8xbf16, #tpu.memory_space<vmem>>, vector<1x1x4x8xbf16>
    %29 = vector.shape_cast %28 : vector<1x1x4x8xbf16> to vector<4x8xbf16>
    %cst_27 = arith.constant dense<0.000000e+00> : vector<64x8xf32>
    %30 = tpu.matmul %27, %29, %cst_27 {dimension_numbers = #tpu.dot_dimension_numbers<[1], [0], [0], [1], [0, 0, 1, 1], [], []>} : vector<64x4xbf16>, vector<4x8xbf16>, vector<64x8xf32> -> vector<64x8xf32>
    %31 = arith.addf %24, %30 : vector<64x8xf32>
    %c0_28 = arith.constant 0 : index
    %c2 = arith.constant 2 : index
    %c0_29 = arith.constant 0 : index
    %32 = vector.load %arg12[%c0_28, %c2, %c0_29] : memref<10x10x4xf32, #tpu.memory_space<vmem>>, vector<8x8x4xf32>
    %33 = vector.shape_cast %32 : vector<8x8x4xf32> to vector<64x4xf32>
    %34 = arith.truncf %33 : vector<64x4xf32> to vector<64x4xbf16>
    %c0_30 = arith.constant 0 : index
    %c2_31 = arith.constant 2 : index
    %c0_32 = arith.constant 0 : index
    %c0_33 = arith.constant 0 : index
    %35 = vector.load %arg7[%c0_30, %c2_31, %c0_32, %c0_33] : memref<1x9x4x8xbf16, #tpu.memory_space<vmem>>, vector<1x1x4x8xbf16>
    %36 = vector.shape_cast %35 : vector<1x1x4x8xbf16> to vector<4x8xbf16>
    %cst_34 = arith.constant dense<0.000000e+00> : vector<64x8xf32>
    %37 = tpu.matmul %34, %36, %cst_34 {dimension_numbers = #tpu.dot_dimension_numbers<[1], [0], [0], [1], [0, 0, 1, 1], [], []>} : vector<64x4xbf16>, vector<4x8xbf16>, vector<64x8xf32> -> vector<64x8xf32>
    %38 = arith.addf %31, %37 : vector<64x8xf32>
    %c1_35 = arith.constant 1 : index
    %c0_36 = arith.constant 0 : index
    %c0_37 = arith.constant 0 : index
    %39 = vector.load %arg12[%c1_35, %c0_36, %c0_37] : memref<10x10x4xf32, #tpu.memory_space<vmem>>, vector<8x8x4xf32>
    %40 = vector.shape_cast %39 : vector<8x8x4xf32> to vector<64x4xf32>
    %41 = arith.truncf %40 : vector<64x4xf32> to vector<64x4xbf16>
    %c0_38 = arith.constant 0 : index
    %c3 = arith.constant 3 : index
    %c0_39 = arith.constant 0 : index
    %c0_40 = arith.constant 0 : index
    %42 = vector.load %arg7[%c0_38, %c3, %c0_39, %c0_40] : memref<1x9x4x8xbf16, #tpu.memory_space<vmem>>, vector<1x1x4x8xbf16>
    %43 = vector.shape_cast %42 : vector<1x1x4x8xbf16> to vector<4x8xbf16>
    %cst_41 = arith.constant dense<0.000000e+00> : vector<64x8xf32>
    %44 = tpu.matmul %41, %43, %cst_41 {dimension_numbers = #tpu.dot_dimension_numbers<[1], [0], [0], [1], [0, 0, 1, 1], [], []>} : vector<64x4xbf16>, vector<4x8xbf16>, vector<64x8xf32> -> vector<64x8xf32>
    %45 = arith.addf %38, %44 : vector<64x8xf32>
    %c1_42 = arith.constant 1 : index
    %c1_43 = arith.constant 1 : index
    %c0_44 = arith.constant 0 : index
    %46 = vector.load %arg12[%c1_42, %c1_43, %c0_44] : memref<10x10x4xf32, #tpu.memory_space<vmem>>, vector<8x8x4xf32>
    %47 = vector.shape_cast %46 : vector<8x8x4xf32> to vector<64x4xf32>
    %48 = arith.truncf %47 : vector<64x4xf32> to vector<64x4xbf16>
    %c0_45 = arith.constant 0 : index
    %c4 = arith.constant 4 : index
    %c0_46 = arith.constant 0 : index
    %c0_47 = arith.constant 0 : index
    %49 = vector.load %arg7[%c0_45, %c4, %c0_46, %c0_47] : memref<1x9x4x8xbf16, #tpu.memory_space<vmem>>, vector<1x1x4x8xbf16>
    %50 = vector.shape_cast %49 : vector<1x1x4x8xbf16> to vector<4x8xbf16>
    %cst_48 = arith.constant dense<0.000000e+00> : vector<64x8xf32>
    %51 = tpu.matmul %48, %50, %cst_48 {dimension_numbers = #tpu.dot_dimension_numbers<[1], [0], [0], [1], [0, 0, 1, 1], [], []>} : vector<64x4xbf16>, vector<4x8xbf16>, vector<64x8xf32> -> vector<64x8xf32>
    %52 = arith.addf %45, %51 : vector<64x8xf32>
    %c1_49 = arith.constant 1 : index
    %c2_50 = arith.constant 2 : index
    %c0_51 = arith.constant 0 : index
    %53 = vector.load %arg12[%c1_49, %c2_50, %c0_51] : memref<10x10x4xf32, #tpu.memory_space<vmem>>, vector<8x8x4xf32>
    %54 = vector.shape_cast %53 : vector<8x8x4xf32> to vector<64x4xf32>
    %55 = arith.truncf %54 : vector<64x4xf32> to vector<64x4xbf16>
    %c0_52 = arith.constant 0 : index
    %c5 = arith.constant 5 : index
    %c0_53 = arith.constant 0 : index
    %c0_54 = arith.constant 0 : index
    %56 = vector.load %arg7[%c0_52, %c5, %c0_53, %c0_54] : memref<1x9x4x8xbf16, #tpu.memory_space<vmem>>, vector<1x1x4x8xbf16>
    %57 = vector.shape_cast %56 : vector<1x1x4x8xbf16> to vector<4x8xbf16>
    %cst_55 = arith.constant dense<0.000000e+00> : vector<64x8xf32>
    %58 = tpu.matmul %55, %57, %cst_55 {dimension_numbers = #tpu.dot_dimension_numbers<[1], [0], [0], [1], [0, 0, 1, 1], [], []>} : vector<64x4xbf16>, vector<4x8xbf16>, vector<64x8xf32> -> vector<64x8xf32>
    %59 = arith.addf %52, %58 : vector<64x8xf32>
    %c2_56 = arith.constant 2 : index
    %c0_57 = arith.constant 0 : index
    %c0_58 = arith.constant 0 : index
    %60 = vector.load %arg12[%c2_56, %c0_57, %c0_58] : memref<10x10x4xf32, #tpu.memory_space<vmem>>, vector<8x8x4xf32>
    %61 = vector.shape_cast %60 : vector<8x8x4xf32> to vector<64x4xf32>
    %62 = arith.truncf %61 : vector<64x4xf32> to vector<64x4xbf16>
    %c0_59 = arith.constant 0 : index
    %c6 = arith.constant 6 : index
    %c0_60 = arith.constant 0 : index
    %c0_61 = arith.constant 0 : index
    %63 = vector.load %arg7[%c0_59, %c6, %c0_60, %c0_61] : memref<1x9x4x8xbf16, #tpu.memory_space<vmem>>, vector<1x1x4x8xbf16>
    %64 = vector.shape_cast %63 : vector<1x1x4x8xbf16> to vector<4x8xbf16>
    %cst_62 = arith.constant dense<0.000000e+00> : vector<64x8xf32>
    %65 = tpu.matmul %62, %64, %cst_62 {dimension_numbers = #tpu.dot_dimension_numbers<[1], [0], [0], [1], [0, 0, 1, 1], [], []>} : vector<64x4xbf16>, vector<4x8xbf16>, vector<64x8xf32> -> vector<64x8xf32>
    %66 = arith.addf %59, %65 : vector<64x8xf32>
    %c2_63 = arith.constant 2 : index
    %c1_64 = arith.constant 1 : index
    %c0_65 = arith.constant 0 : index
    %67 = vector.load %arg12[%c2_63, %c1_64, %c0_65] : memref<10x10x4xf32, #tpu.memory_space<vmem>>, vector<8x8x4xf32>
    %68 = vector.shape_cast %67 : vector<8x8x4xf32> to vector<64x4xf32>
    %69 = arith.truncf %68 : vector<64x4xf32> to vector<64x4xbf16>
    %c0_66 = arith.constant 0 : index
    %c7 = arith.constant 7 : index
    %c0_67 = arith.constant 0 : index
    %c0_68 = arith.constant 0 : index
    %70 = vector.load %arg7[%c0_66, %c7, %c0_67, %c0_68] : memref<1x9x4x8xbf16, #tpu.memory_space<vmem>>, vector<1x1x4x8xbf16>
    %71 = vector.shape_cast %70 : vector<1x1x4x8xbf16> to vector<4x8xbf16>
    %cst_69 = arith.constant dense<0.000000e+00> : vector<64x8xf32>
    %72 = tpu.matmul %69, %71, %cst_69 {dimension_numbers = #tpu.dot_dimension_numbers<[1], [0], [0], [1], [0, 0, 1, 1], [], []>} : vector<64x4xbf16>, vector<4x8xbf16>, vector<64x8xf32> -> vector<64x8xf32>
    %73 = arith.addf %66, %72 : vector<64x8xf32>
    %c2_70 = arith.constant 2 : index
    %c2_71 = arith.constant 2 : index
    %c0_72 = arith.constant 0 : index
    %74 = vector.load %arg12[%c2_70, %c2_71, %c0_72] : memref<10x10x4xf32, #tpu.memory_space<vmem>>, vector<8x8x4xf32>
    %75 = vector.shape_cast %74 : vector<8x8x4xf32> to vector<64x4xf32>
    %76 = arith.truncf %75 : vector<64x4xf32> to vector<64x4xbf16>
    %c0_73 = arith.constant 0 : index
    %c8 = arith.constant 8 : index
    %c0_74 = arith.constant 0 : index
    %c0_75 = arith.constant 0 : index
    %77 = vector.load %arg7[%c0_73, %c8, %c0_74, %c0_75] : memref<1x9x4x8xbf16, #tpu.memory_space<vmem>>, vector<1x1x4x8xbf16>
    %78 = vector.shape_cast %77 : vector<1x1x4x8xbf16> to vector<4x8xbf16>
    %cst_76 = arith.constant dense<0.000000e+00> : vector<64x8xf32>
    %79 = tpu.matmul %76, %78, %cst_76 {dimension_numbers = #tpu.dot_dimension_numbers<[1], [0], [0], [1], [0, 0, 1, 1], [], []>} : vector<64x4xbf16>, vector<4x8xbf16>, vector<64x8xf32> -> vector<64x8xf32>
    %80 = arith.addf %73, %79 : vector<64x8xf32>
    %c0_77 = arith.constant 0 : index
    %c0_78 = arith.constant 0 : index
    %c0_79 = arith.constant 0 : index
    %81 = vector.load %arg8[%c0_77, %c0_78, %c0_79] : memref<1x1x8xf32, #tpu.memory_space<vmem>>, vector<1x1x8xf32>
    %82 = vector.shape_cast %81 : vector<1x1x8xf32> to vector<1x8xf32>
    %83 = vector.broadcast %82 : vector<1x8xf32> to vector<64x8xf32>
    %84 = arith.addf %80, %83 : vector<64x8xf32>
    %cst_80 = arith.constant 1.000000e-01 : f32
    %85 = vector.broadcast %cst_80 : f32 to vector<64x8xf32>
    %86 = arith.mulf %85, %84 : vector<64x8xf32>
    %87 = arith.maximumf %84, %86 : vector<64x8xf32>
    %c0_81 = arith.constant 0 : index
    %c0_82 = arith.constant 0 : index
    %88 = vector.load %arg11[%c0_81, %c0_82] : memref<64x8xf32, #tpu.memory_space<vmem>>, vector<64x8xf32>
    %89 = arith.addf %88, %87 : vector<64x8xf32>
    %c0_83 = arith.constant 0 : index
    %c0_84 = arith.constant 0 : index
    %90 = vector.load %arg11[%c0_83, %c0_84] : memref<64x8xf32, #tpu.memory_space<vmem>>, vector<64x8xf32>
    tpu.vector_store %arg11[%c0_83, %c0_84], %89 {strides = array<i32>} : memref<64x8xf32, #tpu.memory_space<vmem>>, vector<64x8xf32>,
    %c1_i32 = arith.constant 1 : i32
    %91 = arith.cmpi eq, %arg1, %c1_i32 : i32
    %92 = arith.extui %91 : i1 to i32
    %c0_i32_85 = arith.constant 0 : i32
    %93 = arith.cmpi ne, %92, %c0_i32_85 : i32
    scf.if %93 {
      %c0_86 = arith.constant 0 : index
      %c0_87 = arith.constant 0 : index
      %94 = vector.load %arg11[%c0_86, %c0_87] : memref<64x8xf32, #tpu.memory_space<vmem>>, vector<64x8xf32>
      %95 = vector.shape_cast %94 : vector<64x8xf32> to vector<1x8x8x8xf32>
      %96 = arith.truncf %95 : vector<1x8x8x8xf32> to vector<1x8x8x8xbf16>
      %c0_88 = arith.constant 0 : index
      %c0_89 = arith.constant 0 : index
      %c0_90 = arith.constant 0 : index
      %c0_91 = arith.constant 0 : index
      %97 = vector.load %arg9[%c0_88, %c0_89, %c0_90, %c0_91] : memref<1x8x8x8xbf16, #tpu.memory_space<vmem>>, vector<1x8x8x8xbf16>
      tpu.vector_store %arg9[%c0_88, %c0_89, %c0_90, %c0_91], %96 {strides = array<i32>} : memref<1x8x8x8xbf16, #tpu.memory_space<vmem>>, vector<1x8x8x8xbf16>,
    } else {
    }
    return
  }
  func.func @transform_0(%arg0: i32, %arg1: i32) -> (i32, i32, i32, i32) {
    %c0_i32 = arith.constant 0 : i32
    %c0_i32_0 = arith.constant 0 : i32
    %c0_i32_1 = arith.constant 0 : i32
    %c0_i32_2 = arith.constant 0 : i32
    return %arg0, %c0_i32, %c0_i32_0, %c0_i32_1 : i32, i32, i32, i32
  }
  func.func @transform_1(%arg0: i32, %arg1: i32) -> (i32, i32, i32) {
    %c0_i32 = arith.constant 0 : i32
    %c0_i32_0 = arith.constant 0 : i32
    %c0_i32_1 = arith.constant 0 : i32
    %c0_i32_2 = arith.constant 0 : i32
    return %c0_i32, %c0_i32_0, %c0_i32_1 : i32, i32, i32
  }
  func.func @transform_2(%arg0: i32, %arg1: i32) -> (i32, i32) {
    %c0_i32 = arith.constant 0 : i32
    %c0_i32_0 = arith.constant 0 : i32
    %c0_i32_1 = arith.constant 0 : i32
    return %c0_i32, %c0_i32_0 : i32, i32
  }
  func.func @transform_3(%arg0: i32, %arg1: i32) -> (i32, i32, i32) {
    %c0_i32 = arith.constant 0 : i32
    %c0_i32_0 = arith.constant 0 : i32
    %c0_i32_1 = arith.constant 0 : i32
    return %arg1, %c0_i32, %c0_i32_0 : i32, i32, i32
  }
  func.func @transform_4(%arg0: i32, %arg1: i32) -> (i32, i32, i32) {
    %c0_i32 = arith.constant 0 : i32
    %c0_i32_0 = arith.constant 0 : i32
    %c0_i32_1 = arith.constant 0 : i32
    return %arg1, %c0_i32, %c0_i32_0 : i32, i32, i32
  }
  func.func @transform_5(%arg0: i32, %arg1: i32) -> (i32, i32, i32, i32) {
    %c0_i32 = arith.constant 0 : i32
    %c0_i32_0 = arith.constant 0 : i32
    %c0_i32_1 = arith.constant 0 : i32
    %c0_i32_2 = arith.constant 0 : i32
    return %arg1, %c0_i32, %c0_i32_0, %c0_i32_1 : i32, i32, i32, i32
  }
  func.func @transform_6(%arg0: i32, %arg1: i32) -> (i32, i32, i32) {
    %c0_i32 = arith.constant 0 : i32
    %c0_i32_0 = arith.constant 0 : i32
    %c0_i32_1 = arith.constant 0 : i32
    return %arg1, %c0_i32, %c0_i32_0 : i32, i32, i32
  }
  func.func @transform_7(%arg0: i32, %arg1: i32) -> (i32, i32, i32, i32) {
    %c0_i32 = arith.constant 0 : i32
    %c0_i32_0 = arith.constant 0 : i32
    %c0_i32_1 = arith.constant 0 : i32
    %c0_i32_2 = arith.constant 0 : i32
    return %arg0, %c0_i32, %c0_i32_0, %c0_i32_1 : i32, i32, i32, i32
  }
}

</mosaic_0001>

<llo_original>
// kernel: tpu_custom_call.1
$region0: #{tpu_custom_call.1}
  #allocation0 [shape = 'u32[]', space=smem, size = 0x4, offset = 0x4, fixed_abs, tag = 'smem constant byte address 0x4 - core index']
  #allocation1 [shape = 'u32[144,128]{1,0:T(1,128)}', space=vmem, size = 0x12000, scoped, tag = 'internal scratch']
  #allocation2 [shape = 'f32[9,9,16]{2,1,0:T(8,128)}', space=vmem, size = 0x12000, scoped, tag = 'scratch operand']
  #allocation3 [shape = 'f32[64,8]{1,0:T(8,128)}', space=vmem, size = 0x8000, scoped, tag = 'scratch operand']
  #allocation4 [shape = 'f32[10,10,4]{2,1,0:T(8,128)}', space=vmem, size = 0x14000, scoped, tag = 'scratch operand']
  %s0 = inlined_call_operand.vmem [shape: bf16[2,9,9,16], index: 0, kind: input, shape index: {}]
  %s1 = inlined_call_operand.vmem [shape: bf16[4,16,8], index: 1, kind: input, shape index: {}]
  %s2 = inlined_call_operand.vmem [shape: f32[1,8], index: 2, kind: input, shape index: {}]
  %s3 = inlined_call_operand.vmem [shape: bf16[2,8,4], index: 3, kind: input, shape index: {}]
  %s4 = inlined_call_operand.vmem [shape: f32[2,1,4], index: 4, kind: input, shape index: {}]
  %s5 = inlined_call_operand.vmem [shape: bf16[2,9,4,8], index: 5, kind: input, shape index: {}]
  %s6 = inlined_call_operand.vmem [shape: f32[2,1,8], index: 6, kind: input, shape index: {}]
  %s7 = inlined_call_operand.hbm [shape: bf16[2,8,8,8], index: 7, kind: output, shape index: {}]
  %s8 = sld [smem:[#allocation0]]
  $region69: #{tpu_custom_call.1} parent=0
    _
  %s10 = ssub.s32 1, %s8
  %s11 = scalar_select 0, %s10, %s8
  $region1: #{tpu_custom_call.1} parent=0
    #allocation5 [shape = 'u8[32768]{0}', space=vmem, size = 0x8000, scoped, tag = 'output window, operand 0']
    #allocation6 [shape = 's32[2]{0}', space=sflag, size = 0x8, scoped, tag = 'scoped memory for tpu_custom_call.1']
    %12 = vsyncpa [#allocation6], 0
    %s13 = scalar_lea.sflag [#allocation6], 1
    %14 = vsyncpa %s13, 0
    loop: start=0, step=1, limit=6
    $region2: #{tpu_custom_call.1} parent=1 // loop_pre_header
      _
    $region3: #{tpu_custom_call.1} parent=1 // loop_header
      %s16 = sphi 0, %s20
      %p17 = scmp.ge.s32.totalorder %s16, 6
      %s23 = sphi 0, %s35
      %s24 = sphi 0, %s31
      %s25 = sphi 0, %s23
      %s26 = sphi 0, %s24
      %s27 = sphi 0, %s25
      %s28 = sphi 0, %s26
      %s38 = sphi 0, %s40
      %s41 = sphi 0, %s38
      %s42 = sphi 0, %s41
      %s58 = sphi 0, %s42
      %s62 = sphi 0, %s62
      %s64 = sphi 0, %s62
      %s65 = sphi 0, %s64
      %s79 = sphi 0, %s65
      %s83 = sphi 0, %s83
      %s85 = sphi 0, %s83
      %s86 = sphi 0, %s85
      %s100 = sphi 0, %s86
      %s106 = sphi 0, %s108
      %s109 = sphi 0, %s106
      %s110 = sphi 0, %s109
      %s126 = sphi 0, %s110
      %s132 = sphi 0, %s134
      %s135 = sphi 0, %s132
      %s136 = sphi 0, %s135
      %s152 = sphi 0, %s136
      %s158 = sphi 0, %s160
      %s161 = sphi 0, %s158
      %s162 = sphi 0, %s161
      %s178 = sphi 0, %s162
      %s184 = sphi 0, %s186
      %s187 = sphi 0, %s184
      %s188 = sphi 0, %s187
      %s204 = sphi 0, %s188
      %s210 = sphi 0, %s212
      %s213 = sphi 0, %s210
      %s214 = sphi 0, %s213
      %s230 = sphi 0, %s214
    $region4: #{tpu_custom_call.1} parent=1 // loop_header_branch
      %19 = sbr.rel (%p17) target = $region8
    $region5: #{tpu_custom_call.1} parent=1 // loop_body
      %s21 = ssub.s32 %s16, 1
      %s22 = ssub.s32 %s16, 2
      %s29 = sadd.s32 1, %s24
      %p30 = scmp.ge.s32.totalorder %s29, 2
      %s31 = scalar_select %p30, 0, %s29
      %s32 = sadd.s32 1, %s23
      %s33 = scalar_select %p30, %s32, %s23
      %p34 = scmp.ge.s32.totalorder %s33, 2
      %s35 = scalar_select %p34, 0, %s33
      %s36 = ssub.s32 %s23, %s35
      %p37 = scmp.eq.s32.totalorder %s36, 0
      %s39 = sadd.s32 %s38, 1
      %s40 = scalar_select %p37, %s38, %s39
      %p43 = pneg %p37
      %p44 = scmp.eq.s32.totalorder %s16, 3
      %p45 = por %p43, %p44
      %p46 = scmp.ne.s32.totalorder %s38, %s41
      %p47 = scmp.eq.s32.totalorder %s16, 0
      %p48 = por %p46, %p47
      %p49 = scmp.ne.s32.totalorder %s38, %s41
      %p50 = scmp.eq.s32.totalorder %s21, 3
      %p51 = por %p49, %p50
      %p52 = scmp.ne.s32.totalorder %s41, %s42
      %p53 = scmp.eq.s32.totalorder %s21, 0
      %p54 = por %p52, %p53
      %p55 = scmp.ne.s32.totalorder %s41, %s42
      %p56 = scmp.eq.s32.totalorder %s22, 3
      %p57 = por %p55, %p56
      %p59 = scmp.ne.s32.totalorder %s42, %s58
      %p60 = scmp.eq.s32.totalorder %s22, 0
      %p61 = por %p59, %p60
      %s63 = sadd.s32 %s62, 1
      %p66 = scmp.eq.s32.totalorder %s16, 3
      %p67 = scmp.ne.s32.totalorder %s62, %s64
      %p68 = scmp.eq.s32.totalorder %s16, 0
      %p69 = por %p67, %p68
      %p70 = scmp.ne.s32.totalorder %s62, %s64
      %p71 = scmp.eq.s32.totalorder %s21, 3
      %p72 = por %p70, %p71
      %p73 = scmp.ne.s32.totalorder %s64, %s65
      %p74 = scmp.eq.s32.totalorder %s21, 0
      %p75 = por %p73, %p74
      %p76 = scmp.ne.s32.totalorder %s64, %s65
      %p77 = scmp.eq.s32.totalorder %s22, 3
      %p78 = por %p76, %p77
      %p80 = scmp.ne.s32.totalorder %s65, %s79
      %p81 = scmp.eq.s32.totalorder %s22, 0
      %p82 = por %p80, %p81
      %s84 = sadd.s32 %s83, 1
      %p87 = scmp.eq.s32.totalorder %s16, 3
      %p88 = scmp.ne.s32.totalorder %s83, %s85
      %p89 = scmp.eq.s32.totalorder %s16, 0
      %p90 = por %p88, %p89
      %p91 = scmp.ne.s32.totalorder %s83, %s85
      %p92 = scmp.eq.s32.totalorder %s21, 3
      %p93 = por %p91, %p92
      %p94 = scmp.ne.s32.totalorder %s85, %s86
      %p95 = scmp.eq.s32.totalorder %s21, 0
      %p96 = por %p94, %p95
      %p97 = scmp.ne.s32.totalorder %s85, %s86
      %p98 = scmp.eq.s32.totalorder %s22, 3
      %p99 = por %p97, %p98
      %p101 = scmp.ne.s32.totalorder %s86, %s100
      %p102 = scmp.eq.s32.totalorder %s22, 0
      %p103 = por %p101, %p102
      %s104 = ssub.s32 %s24, %s31
      %p105 = scmp.eq.s32.totalorder %s104, 0
      %s107 = sadd.s32 %s106, 1
      %s108 = scalar_select %p105, %s106, %s107
      %p111 = pneg %p105
      %p112 = scmp.eq.s32.totalorder %s16, 3
      %p113 = por %p111, %p112
      %p114 = scmp.ne.s32.totalorder %s106, %s109
      %p115 = scmp.eq.s32.totalorder %s16, 0
      %p116 = por %p114, %p115
      %p117 = scmp.ne.s32.totalorder %s106, %s109
      %p118 = scmp.eq.s32.totalorder %s21, 3
      %p119 = por %p117, %p118
      %p120 = scmp.ne.s32.totalorder %s109, %s110
      %p121 = scmp.eq.s32.totalorder %s21, 0
      %p122 = por %p120, %p121
      %p123 = scmp.ne.s32.totalorder %s109, %s110
      %p124 = scmp.eq.s32.totalorder %s22, 3
      %p125 = por %p123, %p124
      %p127 = scmp.ne.s32.totalorder %s110, %s126
      %p128 = scmp.eq.s32.totalorder %s22, 0
      %p129 = por %p127, %p128
      %s130 = ssub.s32 %s24, %s31
      %p131 = scmp.eq.s32.totalorder %s130, 0
      %s133 = sadd.s32 %s132, 1
      %s134 = scalar_select %p131, %s132, %s133
      %p137 = pneg %p131
      %p138 = scmp.eq.s32.totalorder %s16, 3
      %p139 = por %p137, %p138
      %p140 = scmp.ne.s32.totalorder %s132, %s135
      %p141 = scmp.eq.s32.totalorder %s16, 0
      %p142 = por %p140, %p141
      %p143 = scmp.ne.s32.totalorder %s132, %s135
      %p144 = scmp.eq.s32.totalorder %s21, 3
      %p145 = por %p143, %p144
      %p146 = scmp.ne.s32.totalorder %s135, %s136
      %p147 = scmp.eq.s32.totalorder %s21, 0
      %p148 = por %p146, %p147
      %p149 = scmp.ne.s32.totalorder %s135, %s136
      %p150 = scmp.eq.s32.totalorder %s22, 3
      %p151 = por %p149, %p150
      %p153 = scmp.ne.s32.totalorder %s136, %s152
      %p154 = scmp.eq.s32.totalorder %s22, 0
      %p155 = por %p153, %p154
      %s156 = ssub.s32 %s24, %s31
      %p157 = scmp.eq.s32.totalorder %s156, 0
      %s159 = sadd.s32 %s158, 1
      %s160 = scalar_select %p157, %s158, %s159
      %p163 = pneg %p157
      %p164 = scmp.eq.s32.totalorder %s16, 3
      %p165 = por %p163, %p164
      %p166 = scmp.ne.s32.totalorder %s158, %s161
      %p167 = scmp.eq.s32.totalorder %s16, 0
      %p168 = por %p166, %p167
      %p169 = scmp.ne.s32.totalorder %s158, %s161
      %p170 = scmp.eq.s32.totalorder %s21, 3
      %p171 = por %p169, %p170
      %p172 = scmp.ne.s32.totalorder %s161, %s162
      %p173 = scmp.eq.s32.totalorder %s21, 0
      %p174 = por %p172, %p173
      %p175 = scmp.ne.s32.totalorder %s161, %s162
      %p176 = scmp.eq.s32.totalorder %s22, 3
      %p177 = por %p175, %p176
      %p179 = scmp.ne.s32.totalorder %s162, %s178
      %p180 = scmp.eq.s32.totalorder %s22, 0
      %p181 = por %p179, %p180
      %s182 = ssub.s32 %s24, %s31
      %p183 = scmp.eq.s32.totalorder %s182, 0
      %s185 = sadd.s32 %s184, 1
      %s186 = scalar_select %p183, %s184, %s185
      %p189 = pneg %p183
      %p190 = scmp.eq.s32.totalorder %s16, 3
      %p191 = por %p189, %p190
      %p192 = scmp.ne.s32.totalorder %s184, %s187
      %p193 = scmp.eq.s32.totalorder %s16, 0
      %p194 = por %p192, %p193
      %p195 = scmp.ne.s32.totalorder %s184, %s187
      %p196 = scmp.eq.s32.totalorder %s21, 3
      %p197 = por %p195, %p196
      %p198 = scmp.ne.s32.totalorder %s187, %s188
      %p199 = scmp.eq.s32.totalorder %s21, 0
      %p200 = por %p198, %p199
      %p201 = scmp.ne.s32.totalorder %s187, %s188
      %p202 = scmp.eq.s32.totalorder %s22, 3
      %p203 = por %p201, %p202
      %p205 = scmp.ne.s32.totalorder %s188, %s204
      %p206 = scmp.eq.s32.totalorder %s22, 0
      %p207 = por %p205, %p206
      %s208 = ssub.s32 %s23, %s35
      %p209 = scmp.eq.s32.totalorder %s208, 0
      %s211 = sadd.s32 %s210, 1
      %s212 = scalar_select %p209, %s210, %s211
      %p215 = pneg %p209
      %p216 = scmp.eq.s32.totalorder %s16, 3
      %p217 = por %p215, %p216
      %p218 = scmp.ne.s32.totalorder %s210, %s213
      %p219 = scmp.eq.s32.totalorder %s16, 0
      %p220 = por %p218, %p219
      %p221 = scmp.ne.s32.totalorder %s210, %s213
      %p222 = scmp.eq.s32.totalorder %s21, 3
      %p223 = por %p221, %p222
      %p224 = scmp.ne.s32.totalorder %s213, %s214
      %p225 = scmp.eq.s32.totalorder %s21, 0
      %p226 = por %p224, %p225
      %p227 = scmp.ne.s32.totalorder %s213, %s214
      %p228 = scmp.eq.s32.totalorder %s22, 3
      %p229 = por %p227, %p228
      %p231 = scmp.ne.s32.totalorder %s214, %s230
      %p232 = scmp.eq.s32.totalorder %s22, 0
      %p233 = por %p231, %p232
      %p234 = scmp.le.s32.totalorder 1, %s16
      %p235 = scmp.lt.s32.totalorder %s16, 5
      %p236 = pnand %p234, %p235
      %p237 = pneg %p236
      // Predicated region
      $region9: #{tpu_custom_call.1} parent=5 // pred_check
        _
      $region10: #{tpu_custom_call.1} parent=5 // pred_check_branch
        %239 = sbr.rel (%p236) target = $region12
      $region11: #{tpu_custom_call.1} parent=5 // pred_region
        %s240 = ssub.s32 %s16, 1
        // Predicated region
        $region13: #{tpu_custom_call.1} parent=11 // pred_check
          %p241 = pneg %p75
        $region14: #{tpu_custom_call.1} parent=11 // pred_check_branch
          %243 = sbr.rel (%p241) target = $region16
        $region15: #{tpu_custom_call.1} parent=11 // pred_region
          _
        $region16: #{tpu_custom_call.1} parent=11 // pred_fallthru
          _
        // Predicated region
        $region17: #{tpu_custom_call.1} parent=11 // pred_check
          %p244 = pneg %p96
        $region18: #{tpu_custom_call.1} parent=11 // pred_check_branch
          %246 = sbr.rel (%p244) target = $region20
        $region19: #{tpu_custom_call.1} parent=11 // pred_region
          _
        $region20: #{tpu_custom_call.1} parent=11 // pred_fallthru
          _
      $region12: #{tpu_custom_call.1} parent=5 // pred_fallthru
        _
      %p247 = scmp.lt.s32.totalorder %s16, 4
      // Predicated region
      $region21: #{tpu_custom_call.1} parent=5 // pred_check
        %p248 = pneg %p247
      $region22: #{tpu_custom_call.1} parent=5 // pred_check_branch
        %250 = sbr.rel (%p248) target = $region24
      $region23: #{tpu_custom_call.1} parent=5 // pred_region
        // Predicated region
        $region25: #{tpu_custom_call.1} parent=23 // pred_check
          %p251 = pneg %p48
        $region26: #{tpu_custom_call.1} parent=23 // pred_check_branch
          %253 = sbr.rel (%p251) target = $region28
        $region27: #{tpu_custom_call.1} parent=23 // pred_region
          %p254 = scmp.lt.s32.totalorder %s23, 1
          %s255 = scalar_select %p254, %s23, 1
          %s256 = smul.addr %s255, 18
          %s257 = smul.addr %s256, 4
          %s258 = scalar_lea.vmem %s0, %s257
        $region28: #{tpu_custom_call.1} parent=23 // pred_fallthru
          _
        // Predicated region
        $region29: #{tpu_custom_call.1} parent=23 // pred_check
          %p259 = pneg %p116
        $region30: #{tpu_custom_call.1} parent=23 // pred_check_branch
          %261 = sbr.rel (%p259) target = $region32
        $region31: #{tpu_custom_call.1} parent=23 // pred_region
          %p262 = scmp.lt.s32.totalorder %s24, 1
          %s263 = scalar_select %p262, %s24, 1
          %s264 = smul.addr %s263, 4
          %s265 = scalar_lea.vmem %s3, %s264
        $region32: #{tpu_custom_call.1} parent=23 // pred_fallthru
          _
        // Predicated region
        $region33: #{tpu_custom_call.1} parent=23 // pred_check
          %p266 = pneg %p142
        $region34: #{tpu_custom_call.1} parent=23 // pred_check_branch
          %268 = sbr.rel (%p266) target = $region36
        $region35: #{tpu_custom_call.1} parent=23 // pred_region
          %p269 = scmp.lt.s32.totalorder %s24, 1
          %s270 = scalar_select %p269, %s24, 1
          %s271 = scalar_lea.vmem %s4, %s270
        $region36: #{tpu_custom_call.1} parent=23 // pred_fallthru
          _
        // Predicated region
        $region37: #{tpu_custom_call.1} parent=23 // pred_check
          %p272 = pneg %p168
        $region38: #{tpu_custom_call.1} parent=23 // pred_check_branch
          %274 = sbr.rel (%p272) target = $region40
        $region39: #{tpu_custom_call.1} parent=23 // pred_region
          %p275 = scmp.lt.s32.totalorder %s24, 1
          %s276 = scalar_select %p275, %s24, 1
          %s277 = smul.addr %s276, 9
          %s278 = smul.addr %s277, 2
          %s279 = scalar_lea.vmem %s5, %s278
        $region40: #{tpu_custom_call.1} parent=23 // pred_fallthru
          _
        // Predicated region
        $region41: #{tpu_custom_call.1} parent=23 // pred_check
          %p280 = pneg %p194
        $region42: #{tpu_custom_call.1} parent=23 // pred_check_branch
          %282 = sbr.rel (%p280) target = $region44
        $region43: #{tpu_custom_call.1} parent=23 // pred_region
          %p283 = scmp.lt.s32.totalorder %s24, 1
          %s284 = scalar_select %p283, %s24, 1
          %s285 = scalar_lea.vmem %s6, %s284
        $region44: #{tpu_custom_call.1} parent=23 // pred_fallthru
          _
      $region24: #{tpu_custom_call.1} parent=5 // pred_fallthru
        _
      %p286 = scmp.le.s32.totalorder 1, %s16
      %p287 = scmp.lt.s32.totalorder %s16, 5
      %p288 = pnand %p286, %p287
      %p289 = pneg %p288
      // Predicated region
      $region45: #{tpu_custom_call.1} parent=5 // pred_check
        _
      $region46: #{tpu_custom_call.1} parent=5 // pred_check_branch
        %291 = sbr.rel (%p288) target = $region48
      $region47: #{tpu_custom_call.1} parent=5 // pred_region
        %s292 = ssub.s32 %s16, 1
        %p293 = scmp.lt.s32.totalorder %s25, 1
        %s294 = scalar_select %p293, %s25, 1
        %s295 = smul.addr %s294, 18
        %s296 = smul.addr %s295, 4
        %s297 = scalar_lea.vmem %s0, %s296
        %p298 = pneg %p54
        %p299 = pneg %p51
        %p300 = pneg %p75
        %p301 = pneg %p72
        %p302 = pneg %p96
        %p303 = pneg %p93
        %p304 = scmp.lt.s32.totalorder %s26, 1
        %s305 = scalar_select %p304, %s26, 1
        %s306 = smul.addr %s305, 4
        %s307 = scalar_lea.vmem %s3, %s306
        %p308 = pneg %p122
        %p309 = pneg %p119
        %p310 = scmp.lt.s32.totalorder %s26, 1
        %s311 = scalar_select %p310, %s26, 1
        %s312 = scalar_lea.vmem %s4, %s311
        %p313 = pneg %p148
        %p314 = pneg %p145
        %p315 = scmp.lt.s32.totalorder %s26, 1
        %s316 = scalar_select %p315, %s26, 1
        %s317 = smul.addr %s316, 9
        %s318 = smul.addr %s317, 2
        %s319 = scalar_lea.vmem %s5, %s318
        %p320 = pneg %p174
        %p321 = pneg %p171
        %p322 = scmp.lt.s32.totalorder %s26, 1
        %s323 = scalar_select %p322, %s26, 1
        %s324 = scalar_lea.vmem %s6, %s323
        %p325 = pneg %p200
        %p326 = pneg %p197
        %p327 = pneg %p226
        %p328 = pneg %p223
        %s329 = sand.u32 %s213, 1
        %s330 = scalar_lea.sflag [#allocation6], %s329
        %s331 = sand.u32 %s213, 1
        %s332 = smul.addr %s331, 32
        %s333 = scalar_lea.vmem [#allocation5], %s332
        %p334 = scmp.lt.s32.totalorder %s25, 1
        %s335 = scalar_select %p334, %s25, 1
        %s336 = smul.addr %s335, 18
        %s337 = smul.addr %s336, 4
        %s338 = scalar_lea.vmem %s0, %s337
        %p339 = scmp.lt.s32.totalorder %s26, 1
        %s340 = scalar_select %p339, %s26, 1
        %s341 = smul.addr %s340, 4
        %s342 = scalar_lea.vmem %s3, %s341
        %p343 = scmp.lt.s32.totalorder %s26, 1
        %s344 = scalar_select %p343, %s26, 1
        %s345 = scalar_lea.vmem %s4, %s344
        %p346 = scmp.lt.s32.totalorder %s26, 1
        %s347 = scalar_select %p346, %s26, 1
        %s348 = smul.addr %s347, 9
        %s349 = smul.addr %s348, 2
        %s350 = scalar_lea.vmem %s5, %s349
        %p351 = scmp.lt.s32.totalorder %s26, 1
        %s352 = scalar_select %p351, %s26, 1
        %s353 = scalar_lea.vmem %s6, %s352
        %p355 = scmp.eq.s32.totalorder %s26, 0
        // Predicated region
        $region49: #{tpu_custom_call.1} parent=47 // pred_check
          %p356 = pneg %p355
        $region50: #{tpu_custom_call.1} parent=47 // pred_check_branch
          %358 = sbr.rel (%p356) target = $region52
        $region51: #{tpu_custom_call.1} parent=47 // pred_region
          %v359 = vld [vmem:[%s338] sm:$0xf]
          %v360 = vld [vmem:[%s338 + $0x4] sm:$0x1]
          %v361 = vld [vmem:[%s338 + $0x8] sm:$0xf]
          %v362 = vld [vmem:[%s338 + $0xc] sm:$0x1]
          %v363 = vld [vmem:[%s338 + $0x10] sm:$0xf]
          %v364 = vld [vmem:[%s338 + $0x14] sm:$0x1]
          %v365 = vld [vmem:[%s338 + $0x18] sm:$0xf]
          %v366 = vld [vmem:[%s338 + $0x1c] sm:$0x1]
          %v367 = vld [vmem:[%s338 + $0x20] sm:$0xf]
          %v368 = vld [vmem:[%s338 + $0x24] sm:$0x1]
          %v369 = vld [vmem:[%s338 + $0x28] sm:$0xf]
          %v370 = vld [vmem:[%s338 + $0x2c] sm:$0x1]
          %v371 = vld [vmem:[%s338 + $0x30] sm:$0xf]
          %v372 = vld [vmem:[%s338 + $0x34] sm:$0x1]
          %v373 = vld [vmem:[%s338 + $0x38] sm:$0xf]
          %v374 = vld [vmem:[%s338 + $0x3c] sm:$0x1]
          %v375 = vld [vmem:[%s338 + $0x40] sm:$0xf]
          %v376 = vld [vmem:[%s338 + $0x44] sm:$0x1]
          %v377 = vunpack.c.l.bf16 %v359
          %v378 = vunpack.c.l.bf16 %v360
          %v379 = vunpack.c.l.bf16 %v361
          %v380 = vunpack.c.l.bf16 %v362
          %v381 = vunpack.c.l.bf16 %v363
          %v382 = vunpack.c.l.bf16 %v364
          %v383 = vunpack.c.l.bf16 %v365
          %v384 = vunpack.c.l.bf16 %v366
          %v385 = vunpack.c.l.bf16 %v367
          %v386 = vunpack.c.l.bf16 %v368
          %v387 = vunpack.c.l.bf16 %v369
          %v388 = vunpack.c.l.bf16 %v370
          %v389 = vunpack.c.l.bf16 %v371
          %v390 = vunpack.c.l.bf16 %v372
          %v391 = vunpack.c.l.bf16 %v373
          %v392 = vunpack.c.l.bf16 %v374
          %v393 = vunpack.c.l.bf16 %v375
          %v394 = vunpack.c.l.bf16 %v376
          %vm395 = vcmask 130048
          %396 = vst.msk [vmem:[#allocation2] sm:$0xff] %vm395, %v377
          %vm397 = vcmask 122880
          %398 = vst.msk [vmem:[#allocation2 + $0x8] sm:$0x1] %vm397, %v378
          %399 = vst.msk [vmem:[#allocation2 + $0x10] sm:$0xff] %vm395, %v379
          %400 = vst.msk [vmem:[#allocation2 + $0x18] sm:$0x1] %vm397, %v380
          %401 = vst.msk [vmem:[#allocation2 + $0x20] sm:$0xff] %vm395, %v381
          %402 = vst.msk [vmem:[#allocation2 + $0x28] sm:$0x1] %vm397, %v382
          %403 = vst.msk [vmem:[#allocation2 + $0x30] sm:$0xff] %vm395, %v383
          %404 = vst.msk [vmem:[#allocation2 + $0x38] sm:$0x1] %vm397, %v384
          %405 = vst.msk [vmem:[#allocation2 + $0x40] sm:$0xff] %vm395, %v385
          %406 = vst.msk [vmem:[#allocation2 + $0x48] sm:$0x1] %vm397, %v386
          %407 = vst.msk [vmem:[#allocation2 + $0x50] sm:$0xff] %vm395, %v387
          %408 = vst.msk [vmem:[#allocation2 + $0x58] sm:$0x1] %vm397, %v388
          %409 = vst.msk [vmem:[#allocation2 + $0x60] sm:$0xff] %vm395, %v389
          %410 = vst.msk [vmem:[#allocation2 + $0x68] sm:$0x1] %vm397, %v390
          %411 = vst.msk [vmem:[#allocation2 + $0x70] sm:$0xff] %vm395, %v391
          %412 = vst.msk [vmem:[#allocation2 + $0x78] sm:$0x1] %vm397, %v392
          %413 = vst.msk [vmem:[#allocation2 + $0x80] sm:$0xff] %vm395, %v393
          %414 = vst.msk [vmem:[#allocation2 + $0x88] sm:$0x1] %vm397, %v394
          %vm415 = vcmask 31744
          %416 = vst.msk [vmem:[#allocation4] sm:$0xff] %vm415, 0.0
          %vm417 = vcmask 25600
          %418 = vst.msk [vmem:[#allocation4 + $0x8] sm:$0x3] %vm417, 0.0
          %s419 = scalar_lea.vmem [#allocation4], 144
          %420 = vst.msk [vmem:[%s419] sm:$0xff] %vm415, 0.0
          %421 = vst.msk [vmem:[%s419 + $0x8] sm:$0x3] %vm417, 0.0
          %vm422 = vcmask 24576
          %423 = vst.msk [vmem:[#allocation4] sm:$0x1] %vm422, 0.0
          %424 = vst.msk [vmem:[#allocation4 + $0x10] sm:$0x1] %vm422, 0.0
          %425 = vst.msk [vmem:[#allocation4 + $0x20] sm:$0x1] %vm422, 0.0
          %426 = vst.msk [vmem:[#allocation4 + $0x30] sm:$0x1] %vm422, 0.0
          %427 = vst.msk [vmem:[#allocation4 + $0x40] sm:$0x1] %vm422, 0.0
          %428 = vst.msk [vmem:[#allocation4 + $0x50] sm:$0x1] %vm422, 0.0
          %429 = vst.msk [vmem:[#allocation4 + $0x60] sm:$0x1] %vm422, 0.0
          %430 = vst.msk [vmem:[#allocation4 + $0x70] sm:$0x1] %vm422, 0.0
          %431 = vst.msk [vmem:[#allocation4 + $0x80] sm:$0x1] %vm422, 0.0
          %432 = vst.msk [vmem:[#allocation4 + $0x90] sm:$0x1] %vm422, 0.0
          %433 = vst.msk [vmem:[#allocation4 + $0x9] sm:$0x1] %vm422, 0.0
          %434 = vst.msk [vmem:[#allocation4 + $0x19] sm:$0x1] %vm422, 0.0
          %435 = vst.msk [vmem:[#allocation4 + $0x29] sm:$0x1] %vm422, 0.0
          %436 = vst.msk [vmem:[#allocation4 + $0x39] sm:$0x1] %vm422, 0.0
          %437 = vst.msk [vmem:[#allocation4 + $0x49] sm:$0x1] %vm422, 0.0
          %438 = vst.msk [vmem:[#allocation4 + $0x59] sm:$0x1] %vm422, 0.0
          %439 = vst.msk [vmem:[#allocation4 + $0x69] sm:$0x1] %vm422, 0.0
          %440 = vst.msk [vmem:[#allocation4 + $0x79] sm:$0x1] %vm422, 0.0
          %441 = vst.msk [vmem:[#allocation4 + $0x89] sm:$0x1] %vm422, 0.0
          %442 = vst.msk [vmem:[#allocation4 + $0x99] sm:$0x1] %vm422, 0.0
          %v443 = vld [vmem:[#allocation2] sm:$0xff]
          %v444 = vld [vmem:[#allocation2 + $0x10] sm:$0xff]
          %v445 = vld [vmem:[#allocation2 + $0x20] sm:$0xff]
          %v446 = vld [vmem:[#allocation2 + $0x30] sm:$0xff]
          %v447 = vld [vmem:[#allocation2 + $0x40] sm:$0xff]
          %v448 = vld [vmem:[#allocation2 + $0x50] sm:$0xff]
          %v449 = vld [vmem:[#allocation2 + $0x60] sm:$0xff]
          %v450 = vld [vmem:[#allocation2 + $0x70] sm:$0xff]
          %v451 = vpack.c.bf16 %v444, %v443
          %v452 = vpack.c.bf16 %v446, %v445
          %v453 = vpack.c.bf16 %v448, %v447
          %v454 = vpack.c.bf16 %v450, %v449
          %v455 = vld [vmem:[%s1] sm:$0xf]
          %v456 = vld [vmem:[%s1 + $0x4] sm:$0xf]
          %v457 = vld [vmem:[#allocation2 + $0x1] sm:$0xff]
          %v458 = vld [vmem:[#allocation2 + $0x11] sm:$0xff]
          %v459 = vld [vmem:[#allocation2 + $0x21] sm:$0xff]
          %v460 = vld [vmem:[#allocation2 + $0x31] sm:$0xff]
          %v461 = vld [vmem:[#allocation2 + $0x41] sm:$0xff]
          %v462 = vld [vmem:[#allocation2 + $0x51] sm:$0xff]
          %v463 = vld [vmem:[#allocation2 + $0x61] sm:$0xff]
          %v464 = vld [vmem:[#allocation2 + $0x71] sm:$0xff]
          %v465 = vpack.c.bf16 %v458, %v457
          %v466 = vpack.c.bf16 %v460, %v459
          %v467 = vpack.c.bf16 %v462, %v461
          %v468 = vpack.c.bf16 %v464, %v463
          %s469 = scalar_lea.vmem %s1, 8
          %v470 = vld [vmem:[%s469] sm:$0xf]
          %v471 = vld [vmem:[%s469 + $0x4] sm:$0xf]
          %v474 = vunpack.c.l.b16 %v470
          %v475 = vunpack.c.l.b16 %v471
          %v476 = vpack.c.b16 %v475, %v474
          %v479 = vsel %vm395, %v465, 0
          %v482 = vsel %vm395, %v466, 0
          %v485 = vsel %vm395, %v467, 0
          %v488 = vsel %vm395, %v468, 0
          %490 = vmatprep.subr.bf16.mxu0 0
          %491 = vmatpush1.bf16.msra.mxu0 %v476
          %492 = vmatprep.subr.bf16.mxu0 0
          %493 = vmatpush1.bf16.msra.mxu0 0
          %494 = vmatprep.subr.bf16.mxu0 0
          %495 = vmatpush1.bf16.msra.mxu0 0
          %496 = vmatprep.subr.bf16.mxu0 0
          %497 = vmatpush1.bf16.msra.mxu0 0
          %498 = vmatprep.subr.bf16.mxu0 0
          %499 = vmatpush1.bf16.msra.mxu0 0
          %500 = vmatprep.subr.bf16.mxu0 0
          %501 = vmatpush1.bf16.msra.mxu0 0
          %502 = vmatprep.subr.bf16.mxu0 0
          %503 = vmatpush1.bf16.msra.mxu0 0
          %504 = vmatprep.subr.bf16.mxu0 0
          %505 = vmatpush1.bf16.msra.mxu0 0
          %506 = vmatprep.subr.bf16.mxu0 0
          %507 = vmatpush1.bf16.msra.mxu0 0
          %508 = vmatprep.subr.bf16.mxu0 0
          %509 = vmatpush1.bf16.msra.mxu0 0
          %510 = vmatprep.subr.bf16.mxu0 0
          %511 = vmatpush1.bf16.msra.mxu0 0
          %512 = vmatprep.subr.bf16.mxu0 0
          %513 = vmatpush1.bf16.msra.mxu0 0
          %514 = vmatprep.subr.bf16.mxu0 0
          %515 = vmatpush1.bf16.msra.mxu0 0
          %516 = vmatprep.subr.bf16.mxu0 0
          %517 = vmatpush1.bf16.msra.mxu0 0
          %518 = vmatprep.subr.bf16.mxu0 0
          %519 = vmatpush1.bf16.msra.mxu0 0
          %520 = vmatprep.subr.bf16.mxu0 0
          %521 = vmatpush1.bf16.msra.mxu0 0
          %522 = vmatprep.mubr.bf16.mxu0 0
          %523 = vmatmul.mubr.bf16.gmra.mrb[0].mxu0 %v479
          %v524 = vpop.f32.mrb[0].mxu0
          %v525 = vadd.f32 0.0, %v524
          %v526 = vpop.f32.mrb[0].mxu0
          %v527 = vpop.f32.mrb[0].mxu0
          %v528 = vadd.f32 0.0, %v527
          %v529 = vpop.f32.mrb[0].mxu0
          %530 = vmatprep.mubr.bf16.mxu0 0
          %531 = vmatmul.mubr.bf16.gmra.mrb[0].mxu0 %v482
          %v532 = vpop.f32.mrb[0].mxu0
          %v533 = vadd.f32 0.0, %v532
          %v534 = vpop.f32.mrb[0].mxu0
          %v535 = vpop.f32.mrb[0].mxu0
          %v536 = vadd.f32 0.0, %v535
          %v537 = vpop.f32.mrb[0].mxu0
          %538 = vmatprep.mubr.bf16.mxu0 0
          %539 = vmatmul.mubr.bf16.gmra.mrb[0].mxu0 %v485
          %v540 = vpop.f32.mrb[0].mxu0
          %v541 = vadd.f32 0.0, %v540
          %v542 = vpop.f32.mrb[0].mxu0
          %v543 = vpop.f32.mrb[0].mxu0
          %v544 = vadd.f32 0.0, %v543
          %v545 = vpop.f32.mrb[0].mxu0
          %546 = vmatprep.mubr.bf16.mxu0 0
          %547 = vmatmul.mubr.bf16.gmra.mrb[0].mxu0 %v488
          %v548 = vpop.f32.mrb[0].mxu0
          %v549 = vadd.f32 0.0, %v548
          %v550 = vpop.f32.mrb[0].mxu0
          %v551 = vpop.f32.mrb[0].mxu0
          %v552 = vadd.f32 0.0, %v551
          %v553 = vpop.f32.mrb[0].mxu0
          %554 = vdwg.mxu0
          %v557 = vunpack.c.l.b16 %v455
          %v558 = vunpack.c.l.b16 %v456
          %v559 = vpack.c.b16 %v558, %v557
          %v562 = vsel %vm395, %v451, 0
          %v565 = vsel %vm395, %v452, 0
          %v568 = vsel %vm395, %v453, 0
          %v571 = vsel %vm395, %v454, 0
          %573 = vmatprep.subr.bf16.mxu0 0
          %574 = vmatpush1.bf16.msra.mxu0 %v559
          %575 = vmatprep.subr.bf16.mxu0 0
          %576 = vmatpush1.bf16.msra.mxu0 0
          %577 = vmatprep.subr.bf16.mxu0 0
          %578 = vmatpush1.bf16.msra.mxu0 0
          %579 = vmatprep.subr.bf16.mxu0 0
          %580 = vmatpush1.bf16.msra.mxu0 0
          %581 = vmatprep.subr.bf16.mxu0 0
          %582 = vmatpush1.bf16.msra.mxu0 0
          %583 = vmatprep.subr.bf16.mxu0 0
          %584 = vmatpush1.bf16.msra.mxu0 0
          %585 = vmatprep.subr.bf16.mxu0 0
          %586 = vmatpush1.bf16.msra.mxu0 0
          %587 = vmatprep.subr.bf16.mxu0 0
          %588 = vmatpush1.bf16.msra.mxu0 0
          %589 = vmatprep.subr.bf16.mxu0 0
          %590 = vmatpush1.bf16.msra.mxu0 0
          %591 = vmatprep.subr.bf16.mxu0 0
          %592 = vmatpush1.bf16.msra.mxu0 0
          %593 = vmatprep.subr.bf16.mxu0 0
          %594 = vmatpush1.bf16.msra.mxu0 0
          %595 = vmatprep.subr.bf16.mxu0 0
          %596 = vmatpush1.bf16.msra.mxu0 0
          %597 = vmatprep.subr.bf16.mxu0 0
          %598 = vmatpush1.bf16.msra.mxu0 0
          %599 = vmatprep.subr.bf16.mxu0 0
          %600 = vmatpush1.bf16.msra.mxu0 0
          %601 = vmatprep.subr.bf16.mxu0 0
          %602 = vmatpush1.bf16.msra.mxu0 0
          %603 = vmatprep.subr.bf16.mxu0 0
          %604 = vmatpush1.bf16.msra.mxu0 0
          %605 = vmatprep.mubr.bf16.mxu0 0
          %606 = vmatmul.mubr.bf16.gmra.mrb[0].mxu0 %v562
          %v607 = vpop.f32.mrb[0].mxu0
          %v608 = vadd.f32 %v525, %v607
          %v609 = vpop.f32.mrb[0].mxu0
          %v610 = vpop.f32.mrb[0].mxu0
          %v611 = vadd.f32 %v528, %v610
          %v612 = vpop.f32.mrb[0].mxu0
          %613 = vmatprep.mubr.bf16.mxu0 0
          %614 = vmatmul.mubr.bf16.gmra.mrb[0].mxu0 %v565
          %v615 = vpop.f32.mrb[0].mxu0
          %v616 = vadd.f32 %v533, %v615
          %v617 = vpop.f32.mrb[0].mxu0
          %v618 = vpop.f32.mrb[0].mxu0
          %v619 = vadd.f32 %v536, %v618
          %v620 = vpop.f32.mrb[0].mxu0
          %621 = vmatprep.mubr.bf16.mxu0 0
          %622 = vmatmul.mubr.bf16.gmra.mrb[0].mxu0 %v568
          %v623 = vpop.f32.mrb[0].mxu0
          %v624 = vadd.f32 %v541, %v623
          %v625 = vpop.f32.mrb[0].mxu0
          %v626 = vpop.f32.mrb[0].mxu0
          %v627 = vadd.f32 %v544, %v626
          %v628 = vpop.f32.mrb[0].mxu0
          %629 = vmatprep.mubr.bf16.mxu0 0
          %630 = vmatmul.mubr.bf16.gmra.mrb[0].mxu0 %v571
          %v631 = vpop.f32.mrb[0].mxu0
          %v632 = vadd.f32 %v549, %v631
          %v633 = vpop.f32.mrb[0].mxu0
          %v634 = vpop.f32.mrb[0].mxu0
          %v635 = vadd.f32 %v552, %v634
          %v636 = vpop.f32.mrb[0].mxu0
          %637 = vdwg.mxu0
          %s638 = scalar_lea.vmem [#allocation2], 16
          %v639 = vld [vmem:[%s638] sm:$0xff]
          %v640 = vld [vmem:[%s638 + $0x10] sm:$0xff]
          %v641 = vld [vmem:[%s638 + $0x20] sm:$0xff]
          %v642 = vld [vmem:[%s638 + $0x30] sm:$0xff]
          %v643 = vld [vmem:[%s638 + $0x40] sm:$0xff]
          %v644 = vld [vmem:[%s638 + $0x50] sm:$0xff]
          %v645 = vld [vmem:[%s638 + $0x60] sm:$0xff]
          %v646 = vld [vmem:[%s638 + $0x70] sm:$0xff]
          %v647 = vpack.c.bf16 %v640, %v639
          %v648 = vpack.c.bf16 %v642, %v641
          %v649 = vpack.c.bf16 %v644, %v643
          %v650 = vpack.c.bf16 %v646, %v645
          %s651 = scalar_lea.vmem %s1, 16
          %v652 = vld [vmem:[%s651] sm:$0xf]
          %v653 = vld [vmem:[%s651 + $0x4] sm:$0xf]
          %v656 = vunpack.c.l.b16 %v652
          %v657 = vunpack.c.l.b16 %v653
          %v658 = vpack.c.b16 %v657, %v656
          %v661 = vsel %vm395, %v647, 0
          %v664 = vsel %vm395, %v648, 0
          %v667 = vsel %vm395, %v649, 0
          %v670 = vsel %vm395, %v650, 0
          %672 = vmatprep.subr.bf16.mxu0 0
          %673 = vmatpush1.bf16.msra.mxu0 %v658
          %674 = vmatprep.subr.bf16.mxu0 0
          %675 = vmatpush1.bf16.msra.mxu0 0
          %676 = vmatprep.subr.bf16.mxu0 0
          %677 = vmatpush1.bf16.msra.mxu0 0
          %678 = vmatprep.subr.bf16.mxu0 0
          %679 = vmatpush1.bf16.msra.mxu0 0
          %680 = vmatprep.subr.bf16.mxu0 0
          %681 = vmatpush1.bf16.msra.mxu0 0
          %682 = vmatprep.subr.bf16.mxu0 0
          %683 = vmatpush1.bf16.msra.mxu0 0
          %684 = vmatprep.subr.bf16.mxu0 0
          %685 = vmatpush1.bf16.msra.mxu0 0
          %686 = vmatprep.subr.bf16.mxu0 0
          %687 = vmatpush1.bf16.msra.mxu0 0
          %688 = vmatprep.subr.bf16.mxu0 0
          %689 = vmatpush1.bf16.msra.mxu0 0
          %690 = vmatprep.subr.bf16.mxu0 0
          %691 = vmatpush1.bf16.msra.mxu0 0
          %692 = vmatprep.subr.bf16.mxu0 0
          %693 = vmatpush1.bf16.msra.mxu0 0
          %694 = vmatprep.subr.bf16.mxu0 0
          %695 = vmatpush1.bf16.msra.mxu0 0
          %696 = vmatprep.subr.bf16.mxu0 0
          %697 = vmatpush1.bf16.msra.mxu0 0
          %698 = vmatprep.subr.bf16.mxu0 0
          %699 = vmatpush1.bf16.msra.mxu0 0
          %700 = vmatprep.subr.bf16.mxu0 0
          %701 = vmatpush1.bf16.msra.mxu0 0
          %702 = vmatprep.subr.bf16.mxu0 0
          %703 = vmatpush1.bf16.msra.mxu0 0
          %704 = vmatprep.mubr.bf16.mxu0 0
          %705 = vmatmul.mubr.bf16.gmra.mrb[0].mxu0 %v661
          %v706 = vpop.f32.mrb[0].mxu0
          %v707 = vadd.f32 0.0, %v706
          %v708 = vpop.f32.mrb[0].mxu0
          %v709 = vpop.f32.mrb[0].mxu0
          %v710 = vadd.f32 0.0, %v709
          %v711 = vpop.f32.mrb[0].mxu0
          %712 = vmatprep.mubr.bf16.mxu0 0
          %713 = vmatmul.mubr.bf16.gmra.mrb[0].mxu0 %v664
          %v714 = vpop.f32.mrb[0].mxu0
          %v715 = vadd.f32 0.0, %v714
          %v716 = vpop.f32.mrb[0].mxu0
          %v717 = vpop.f32.mrb[0].mxu0
          %v718 = vadd.f32 0.0, %v717
          %v719 = vpop.f32.mrb[0].mxu0
          %720 = vmatprep.mubr.bf16.mxu0 0
          %721 = vmatmul.mubr.bf16.gmra.mrb[0].mxu0 %v667
          %v722 = vpop.f32.mrb[0].mxu0
          %v723 = vadd.f32 0.0, %v722
          %v724 = vpop.f32.mrb[0].mxu0
          %v725 = vpop.f32.mrb[0].mxu0
          %v726 = vadd.f32 0.0, %v725
          %v727 = vpop.f32.mrb[0].mxu0
          %728 = vmatprep.mubr.bf16.mxu0 0
          %729 = vmatmul.mubr.bf16.gmra.mrb[0].mxu0 %v670
          %v730 = vpop.f32.mrb[0].mxu0
          %v731 = vadd.f32 0.0, %v730
          %v732 = vpop.f32.mrb[0].mxu0
          %v733 = vpop.f32.mrb[0].mxu0
          %v734 = vadd.f32 0.0, %v733
          %v735 = vpop.f32.mrb[0].mxu0
          %736 = vdwg.mxu0
          %v737 = vadd.f32 %v608, %v707
          %v738 = vadd.f32 %v611, %v710
          %v739 = vadd.f32 %v616, %v715
          %v740 = vadd.f32 %v619, %v718
          %v741 = vadd.f32 %v624, %v723
          %v742 = vadd.f32 %v627, %v726
          %v743 = vadd.f32 %v632, %v731
          %v744 = vadd.f32 %v635, %v734
          %v745 = vld [vmem:[%s638 + $0x1] sm:$0xff]
          %v746 = vld [vmem:[%s638 + $0x11] sm:$0xff]
          %v747 = vld [vmem:[%s638 + $0x21] sm:$0xff]
          %v748 = vld [vmem:[%s638 + $0x31] sm:$0xff]
          %v749 = vld [vmem:[%s638 + $0x41] sm:$0xff]
          %v750 = vld [vmem:[%s638 + $0x51] sm:$0xff]
          %v751 = vld [vmem:[%s638 + $0x61] sm:$0xff]
          %v752 = vld [vmem:[%s638 + $0x71] sm:$0xff]
          %v753 = vpack.c.bf16 %v746, %v745
          %v754 = vpack.c.bf16 %v748, %v747
          %v755 = vpack.c.bf16 %v750, %v749
          %v756 = vpack.c.bf16 %v752, %v751
          %s757 = scalar_lea.vmem %s1, 24
          %v758 = vld [vmem:[%s757] sm:$0xf]
          %v759 = vld [vmem:[%s757 + $0x4] sm:$0xf]
          %v762 = vunpack.c.l.b16 %v758
          %v763 = vunpack.c.l.b16 %v759
          %v764 = vpack.c.b16 %v763, %v762
          %v767 = vsel %vm395, %v753, 0
          %v770 = vsel %vm395, %v754, 0
          %v773 = vsel %vm395, %v755, 0
          %v776 = vsel %vm395, %v756, 0
          %778 = vmatprep.subr.bf16.mxu0 0
          %779 = vmatpush1.bf16.msra.mxu0 %v764
          %780 = vmatprep.subr.bf16.mxu0 0
          %781 = vmatpush1.bf16.msra.mxu0 0
          %782 = vmatprep.subr.bf16.mxu0 0
          %783 = vmatpush1.bf16.msra.mxu0 0
          %784 = vmatprep.subr.bf16.mxu0 0
          %785 = vmatpush1.bf16.msra.mxu0 0
          %786 = vmatprep.subr.bf16.mxu0 0
          %787 = vmatpush1.bf16.msra.mxu0 0
          %788 = vmatprep.subr.bf16.mxu0 0
          %789 = vmatpush1.bf16.msra.mxu0 0
          %790 = vmatprep.subr.bf16.mxu0 0
          %791 = vmatpush1.bf16.msra.mxu0 0
          %792 = vmatprep.subr.bf16.mxu0 0
          %793 = vmatpush1.bf16.msra.mxu0 0
          %794 = vmatprep.subr.bf16.mxu0 0
          %795 = vmatpush1.bf16.msra.mxu0 0
          %796 = vmatprep.subr.bf16.mxu0 0
          %797 = vmatpush1.bf16.msra.mxu0 0
          %798 = vmatprep.subr.bf16.mxu0 0
          %799 = vmatpush1.bf16.msra.mxu0 0
          %800 = vmatprep.subr.bf16.mxu0 0
          %801 = vmatpush1.bf16.msra.mxu0 0
          %802 = vmatprep.subr.bf16.mxu0 0
          %803 = vmatpush1.bf16.msra.mxu0 0
          %804 = vmatprep.subr.bf16.mxu0 0
          %805 = vmatpush1.bf16.msra.mxu0 0
          %806 = vmatprep.subr.bf16.mxu0 0
          %807 = vmatpush1.bf16.msra.mxu0 0
          %808 = vmatprep.subr.bf16.mxu0 0
          %809 = vmatpush1.bf16.msra.mxu0 0
          %810 = vmatprep.mubr.bf16.mxu0 0
          %811 = vmatmul.mubr.bf16.gmra.mrb[0].mxu0 %v767
          %v812 = vpop.f32.mrb[0].mxu0
          %v813 = vadd.f32 0.0, %v812
          %v814 = vpop.f32.mrb[0].mxu0
          %v815 = vpop.f32.mrb[0].mxu0
          %v816 = vadd.f32 0.0, %v815
          %v817 = vpop.f32.mrb[0].mxu0
          %818 = vmatprep.mubr.bf16.mxu0 0
          %819 = vmatmul.mubr.bf16.gmra.mrb[0].mxu0 %v770
          %v820 = vpop.f32.mrb[0].mxu0
          %v821 = vadd.f32 0.0, %v820
          %v822 = vpop.f32.mrb[0].mxu0
          %v823 = vpop.f32.mrb[0].mxu0
          %v824 = vadd.f32 0.0, %v823
          %v825 = vpop.f32.mrb[0].mxu0
          %826 = vmatprep.mubr.bf16.mxu0 0
          %827 = vmatmul.mubr.bf16.gmra.mrb[0].mxu0 %v773
          %v828 = vpop.f32.mrb[0].mxu0
          %v829 = vadd.f32 0.0, %v828
          %v830 = vpop.f32.mrb[0].mxu0
          %v831 = vpop.f32.mrb[0].mxu0
          %v832 = vadd.f32 0.0, %v831
          %v833 = vpop.f32.mrb[0].mxu0
          %834 = vmatprep.mubr.bf16.mxu0 0
          %835 = vmatmul.mubr.bf16.gmra.mrb[0].mxu0 %v776
          %v836 = vpop.f32.mrb[0].mxu0
          %v837 = vadd.f32 0.0, %v836
          %v838 = vpop.f32.mrb[0].mxu0
          %v839 = vpop.f32.mrb[0].mxu0
          %v840 = vadd.f32 0.0, %v839
          %v841 = vpop.f32.mrb[0].mxu0
          %842 = vdwg.mxu0
          %v843 = vadd.f32 %v737, %v813
          %v844 = vadd.f32 %v738, %v816
          %v845 = vadd.f32 %v739, %v821
          %v846 = vadd.f32 %v740, %v824
          %v847 = vadd.f32 %v741, %v829
          %v848 = vadd.f32 %v742, %v832
          %v849 = vadd.f32 %v743, %v837
          %v850 = vadd.f32 %v744, %v840
          %v851 = vld [vmem:[%s2] sm:$0x1]
          %v853 = vlaneseq
          %v854 = vshrl.u32 %v853, 7
          %v855 = vsub.s32 0, %v854
          %v856 = vrot.slane %v851, %v855
          %v858 = vadd.f32 %v843, %v856
          %v859 = vadd.f32 %v844, %v856
          %v860 = vadd.f32 %v845, %v856
          %v861 = vadd.f32 %v846, %v856
          %v862 = vadd.f32 %v847, %v856
          %v863 = vadd.f32 %v848, %v856
          %v864 = vadd.f32 %v849, %v856
          %v865 = vadd.f32 %v850, %v856
          %v866 = vmul.f32 %v858, 0.1
          %v867 = vmul.f32 %v859, 0.1
          %v868 = vmul.f32 %v860, 0.1
          %v869 = vmul.f32 %v861, 0.1
          %v870 = vmul.f32 %v862, 0.1
          %v871 = vmul.f32 %v863, 0.1
          %v872 = vmul.f32 %v864, 0.1
          %v873 = vmul.f32 %v865, 0.1
          %v874 = vmax.f32 %v858, %v866
          %v875 = vmax.f32 %v859, %v867
          %v876 = vmax.f32 %v860, %v868
          %v877 = vmax.f32 %v861, %v869
          %v878 = vmax.f32 %v862, %v870
          %v879 = vmax.f32 %v863, %v871
          %v880 = vmax.f32 %v864, %v872
          %v881 = vmax.f32 %v865, %v873
          %vm882 = vcmask 64512
          %883 = vst.msk [vmem:[#allocation3] sm:$0xff] %vm882, %v874
          %884 = vst.msk [vmem:[#allocation3 + $0x8] sm:$0xff] %vm882, %v875
          %885 = vst.msk [vmem:[#allocation3 + $0x10] sm:$0xff] %vm882, %v876
          %886 = vst.msk [vmem:[#allocation3 + $0x18] sm:$0xff] %vm882, %v877
          %887 = vst.msk [vmem:[#allocation3 + $0x20] sm:$0xff] %vm882, %v878
          %888 = vst.msk [vmem:[#allocation3 + $0x28] sm:$0xff] %vm882, %v879
          %889 = vst.msk [vmem:[#allocation3 + $0x30] sm:$0xff] %vm882, %v880
          %890 = vst.msk [vmem:[#allocation3 + $0x38] sm:$0xff] %vm882, %v881
        $region52: #{tpu_custom_call.1} parent=47 // pred_fallthru
          _
        %v891 = vld [vmem:[#allocation3] sm:$0xff]
        %v892 = vld [vmem:[#allocation3 + $0x8] sm:$0xff]
        %v893 = vld [vmem:[#allocation3 + $0x10] sm:$0xff]
        %v894 = vld [vmem:[#allocation3 + $0x18] sm:$0xff]
        %v895 = vld [vmem:[#allocation3 + $0x20] sm:$0xff]
        %v896 = vld [vmem:[#allocation3 + $0x28] sm:$0xff]
        %v897 = vld [vmem:[#allocation3 + $0x30] sm:$0xff]
        %v898 = vld [vmem:[#allocation3 + $0x38] sm:$0xff]
        %v899 = vpack.c.bf16 %v892, %v891
        %v900 = vpack.c.bf16 %v894, %v893
        %v901 = vpack.c.bf16 %v896, %v895
        %v902 = vpack.c.bf16 %v898, %v897
        %v903 = vld [vmem:[%s342] sm:$0xf]
        %v904 = vld [vmem:[%s345] sm:$0x1]
        %v906 = vlaneseq
        %v907 = vshrl.u32 %v906, 7
        %v908 = vsub.s32 0, %v907
        %v909 = vrot.slane %v904, %v908
        %vm911 = vcmask 64512
        %v913 = vsel %vm911, %v899, 0
        %v916 = vsel %vm911, %v900, 0
        %v919 = vsel %vm911, %v901, 0
        %v922 = vsel %vm911, %v902, 0
        %vm924 = vcmask 1043456
        %v926 = vsel %vm924, %v903, 0
        %928 = vmatprep.subr.bf16.mxu0 0
        %929 = vmatpush1.bf16.msra.mxu0 %v926
        %930 = vmatprep.subr.bf16.mxu0 0
        %931 = vmatpush1.bf16.msra.mxu0 0
        %932 = vmatprep.subr.bf16.mxu0 0
        %933 = vmatpush1.bf16.msra.mxu0 0
        %934 = vmatprep.subr.bf16.mxu0 0
        %935 = vmatpush1.bf16.msra.mxu0 0
        %936 = vmatprep.subr.bf16.mxu0 0
        %937 = vmatpush1.bf16.msra.mxu0 0
        %938 = vmatprep.subr.bf16.mxu0 0
        %939 = vmatpush1.bf16.msra.mxu0 0
        %940 = vmatprep.subr.bf16.mxu0 0
        %941 = vmatpush1.bf16.msra.mxu0 0
        %942 = vmatprep.subr.bf16.mxu0 0
        %943 = vmatpush1.bf16.msra.mxu0 0
        %944 = vmatprep.subr.bf16.mxu0 0
        %945 = vmatpush1.bf16.msra.mxu0 0
        %946 = vmatprep.subr.bf16.mxu0 0
        %947 = vmatpush1.bf16.msra.mxu0 0
        %948 = vmatprep.subr.bf16.mxu0 0
        %949 = vmatpush1.bf16.msra.mxu0 0
        %950 = vmatprep.subr.bf16.mxu0 0
        %951 = vmatpush1.bf16.msra.mxu0 0
        %952 = vmatprep.subr.bf16.mxu0 0
        %953 = vmatpush1.bf16.msra.mxu0 0
        %954 = vmatprep.subr.bf16.mxu0 0
        %955 = vmatpush1.bf16.msra.mxu0 0
        %956 = vmatprep.subr.bf16.mxu0 0
        %957 = vmatpush1.bf16.msra.mxu0 0
        %958 = vmatprep.subr.bf16.mxu0 0
        %959 = vmatpush1.bf16.msra.mxu0 0
        %960 = vmatprep.mubr.bf16.mxu0 0
        %961 = vmatmul.mubr.bf16.gmra.mrb[0].mxu0 %v913
        %v962 = vpop.f32.mrb[0].mxu0
        %v963 = vadd.f32 %v909, %v962
        %v964 = vpop.f32.mrb[0].mxu0
        %v965 = vpop.f32.mrb[0].mxu0
        %v966 = vadd.f32 %v909, %v965
        %v967 = vpop.f32.mrb[0].mxu0
        %968 = vmatprep.mubr.bf16.mxu0 0
        %969 = vmatmul.mubr.bf16.gmra.mrb[0].mxu0 %v916
        %v970 = vpop.f32.mrb[0].mxu0
        %v971 = vadd.f32 %v909, %v970
        %v972 = vpop.f32.mrb[0].mxu0
        %v973 = vpop.f32.mrb[0].mxu0
        %v974 = vadd.f32 %v909, %v973
        %v975 = vpop.f32.mrb[0].mxu0
        %976 = vmatprep.mubr.bf16.mxu0 0
        %977 = vmatmul.mubr.bf16.gmra.mrb[0].mxu0 %v919
        %v978 = vpop.f32.mrb[0].mxu0
        %v979 = vadd.f32 %v909, %v978
        %v980 = vpop.f32.mrb[0].mxu0
        %v981 = vpop.f32.mrb[0].mxu0
        %v982 = vadd.f32 %v909, %v981
        %v983 = vpop.f32.mrb[0].mxu0
        %984 = vmatprep.mubr.bf16.mxu0 0
        %985 = vmatmul.mubr.bf16.gmra.mrb[0].mxu0 %v922
        %v986 = vpop.f32.mrb[0].mxu0
        %v987 = vadd.f32 %v909, %v986
        %v988 = vpop.f32.mrb[0].mxu0
        %v989 = vpop.f32.mrb[0].mxu0
        %v990 = vadd.f32 %v909, %v989
        %v991 = vpop.f32.mrb[0].mxu0
        %992 = vdwg.mxu0
        %v993 = vmul.f32 %v963, 0.1
        %v994 = vmul.f32 %v966, 0.1
        %v995 = vmul.f32 %v971, 0.1
        %v996 = vmul.f32 %v974, 0.1
        %v997 = vmul.f32 %v979, 0.1
        %v998 = vmul.f32 %v982, 0.1
        %v999 = vmul.f32 %v987, 0.1
        %v1000 = vmul.f32 %v990, 0.1
        %v1001 = vmax.f32 %v963, %v993
        %v1002 = vmax.f32 %v966, %v994
        %v1003 = vmax.f32 %v971, %v995
        %v1004 = vmax.f32 %v974, %v996
        %v1005 = vmax.f32 %v979, %v997
        %v1006 = vmax.f32 %v982, %v998
        %v1007 = vmax.f32 %v987, %v999
        %v1008 = vmax.f32 %v990, %v1000
        %s1009 = scalar_lea.vmem [#allocation4], 16
        %vm1010 = vcmask 31744
        %1011 = vst.msk [vmem:[%s1009 + $0x1] sm:$0xff] %vm1010, %v1001
        %1012 = vst.msk [vmem:[%s1009 + $0x11] sm:$0xff] %vm1010, %v1002
        %1013 = vst.msk [vmem:[%s1009 + $0x21] sm:$0xff] %vm1010, %v1003
        %1014 = vst.msk [vmem:[%s1009 + $0x31] sm:$0xff] %vm1010, %v1004
        %1015 = vst.msk [vmem:[%s1009 + $0x41] sm:$0xff] %vm1010, %v1005
        %1016 = vst.msk [vmem:[%s1009 + $0x51] sm:$0xff] %vm1010, %v1006
        %1017 = vst.msk [vmem:[%s1009 + $0x61] sm:$0xff] %vm1010, %v1007
        %1018 = vst.msk [vmem:[%s1009 + $0x71] sm:$0xff] %vm1010, %v1008
        %v1019 = vld [vmem:[#allocation4] sm:$0xff]
        %v1020 = vld [vmem:[#allocation4 + $0x10] sm:$0xff]
        %v1021 = vld [vmem:[#allocation4 + $0x20] sm:$0xff]
        %v1022 = vld [vmem:[#allocation4 + $0x30] sm:$0xff]
        %v1023 = vld [vmem:[#allocation4 + $0x40] sm:$0xff]
        %v1024 = vld [vmem:[#allocation4 + $0x50] sm:$0xff]
        %v1025 = vld [vmem:[#allocation4 + $0x60] sm:$0xff]
        %v1026 = vld [vmem:[#allocation4 + $0x70] sm:$0xff]
        %v1027 = vpack.c.bf16 %v1020, %v1019
        %v1028 = vpack.c.bf16 %v1022, %v1021
        %v1029 = vpack.c.bf16 %v1024, %v1023
        %v1030 = vpack.c.bf16 %v1026, %v1025
        %v1031 = vld [vmem:[%s350] sm:$0x3]
        %v1032 = vld [vmem:[#allocation4 + $0x1] sm:$0xff]
        %v1033 = vld [vmem:[#allocation4 + $0x11] sm:$0xff]
        %v1034 = vld [vmem:[#allocation4 + $0x21] sm:$0xff]
        %v1035 = vld [vmem:[#allocation4 + $0x31] sm:$0xff]
        %v1036 = vld [vmem:[#allocation4 + $0x41] sm:$0xff]
        %v1037 = vld [vmem:[#allocation4 + $0x51] sm:$0xff]
        %v1038 = vld [vmem:[#allocation4 + $0x61] sm:$0xff]
        %v1039 = vld [vmem:[#allocation4 + $0x71] sm:$0xff]
        %v1040 = vpack.c.bf16 %v1033, %v1032
        %v1041 = vpack.c.bf16 %v1035, %v1034
        %v1042 = vpack.c.bf16 %v1037, %v1036
        %v1043 = vpack.c.bf16 %v1039, %v1038
        %s1044 = scalar_lea.vmem %s350, 2
        %v1045 = vld [vmem:[%s1044] sm:$0x3]
        %v1047 = vsel %vm1010, %v1040, 0
        %v1050 = vsel %vm1010, %v1041, 0
        %v1053 = vsel %vm1010, %v1042, 0
        %v1056 = vsel %vm1010, %v1043, 0
        %vm1058 = vcmask 1041408
        %v1060 = vsel %vm1058, %v1045, 0
        %1062 = vmatprep.subr.bf16.mxu0 0
        %1063 = vmatpush1.bf16.msra.mxu0 %v1060
        %1064 = vmatprep.subr.bf16.mxu0 0
        %1065 = vmatpush1.bf16.msra.mxu0 0
        %1066 = vmatprep.subr.bf16.mxu0 0
        %1067 = vmatpush1.bf16.msra.mxu0 0
        %1068 = vmatprep.subr.bf16.mxu0 0
        %1069 = vmatpush1.bf16.msra.mxu0 0
        %1070 = vmatprep.subr.bf16.mxu0 0
        %1071 = vmatpush1.bf16.msra.mxu0 0
        %1072 = vmatprep.subr.bf16.mxu0 0
        %1073 = vmatpush1.bf16.msra.mxu0 0
        %1074 = vmatprep.subr.bf16.mxu0 0
        %1075 = vmatpush1.bf16.msra.mxu0 0
        %1076 = vmatprep.subr.bf16.mxu0 0
        %1077 = vmatpush1.bf16.msra.mxu0 0
        %1078 = vmatprep.subr.bf16.mxu0 0
        %1079 = vmatpush1.bf16.msra.mxu0 0
        %1080 = vmatprep.subr.bf16.mxu0 0
        %1081 = vmatpush1.bf16.msra.mxu0 0
        %1082 = vmatprep.subr.bf16.mxu0 0
        %1083 = vmatpush1.bf16.msra.mxu0 0
        %1084 = vmatprep.subr.bf16.mxu0 0
        %1085 = vmatpush1.bf16.msra.mxu0 0
        %1086 = vmatprep.subr.bf16.mxu0 0
        %1087 = vmatpush1.bf16.msra.mxu0 0
        %1088 = vmatprep.subr.bf16.mxu0 0
        %1089 = vmatpush1.bf16.msra.mxu0 0
        %1090 = vmatprep.subr.bf16.mxu0 0
        %1091 = vmatpush1.bf16.msra.mxu0 0
        %1092 = vmatprep.subr.bf16.mxu0 0
        %1093 = vmatpush1.bf16.msra.mxu0 0
        %1094 = vmatprep.mubr.bf16.mxu0 0
        %1095 = vmatmul.mubr.bf16.gmra.mrb[0].mxu0 %v1047
        %v1096 = vpop.f32.mrb[0].mxu0
        %v1097 = vadd.f32 0.0, %v1096
        %v1098 = vpop.f32.mrb[0].mxu0
        %v1099 = vpop.f32.mrb[0].mxu0
        %v1100 = vadd.f32 0.0, %v1099
        %v1101 = vpop.f32.mrb[0].mxu0
        %1102 = vmatprep.mubr.bf16.mxu0 0
        %1103 = vmatmul.mubr.bf16.gmra.mrb[0].mxu0 %v1050
        %v1104 = vpop.f32.mrb[0].mxu0
        %v1105 = vadd.f32 0.0, %v1104
        %v1106 = vpop.f32.mrb[0].mxu0
        %v1107 = vpop.f32.mrb[0].mxu0
        %v1108 = vadd.f32 0.0, %v1107
        %v1109 = vpop.f32.mrb[0].mxu0
        %1110 = vmatprep.mubr.bf16.mxu0 0
        %1111 = vmatmul.mubr.bf16.gmra.mrb[0].mxu0 %v1053
        %v1112 = vpop.f32.mrb[0].mxu0
        %v1113 = vadd.f32 0.0, %v1112
        %v1114 = vpop.f32.mrb[0].mxu0
        %v1115 = vpop.f32.mrb[0].mxu0
        %v1116 = vadd.f32 0.0, %v1115
        %v1117 = vpop.f32.mrb[0].mxu0
        %1118 = vmatprep.mubr.bf16.mxu0 0
        %1119 = vmatmul.mubr.bf16.gmra.mrb[0].mxu0 %v1056
        %v1120 = vpop.f32.mrb[0].mxu0
        %v1121 = vadd.f32 0.0, %v1120
        %v1122 = vpop.f32.mrb[0].mxu0
        %v1123 = vpop.f32.mrb[0].mxu0
        %v1124 = vadd.f32 0.0, %v1123
        %v1125 = vpop.f32.mrb[0].mxu0
        %1126 = vdwg.mxu0
        %v1128 = vsel %vm1010, %v1027, 0
        %v1131 = vsel %vm1010, %v1028, 0
        %v1134 = vsel %vm1010, %v1029, 0
        %v1137 = vsel %vm1010, %v1030, 0
        %v1140 = vsel %vm1058, %v1031, 0
        %1142 = vmatprep.subr.bf16.mxu0 0
        %1143 = vmatpush1.bf16.msra.mxu0 %v1140
        %1144 = vmatprep.subr.bf16.mxu0 0
        %1145 = vmatpush1.bf16.msra.mxu0 0
        %1146 = vmatprep.subr.bf16.mxu0 0
        %1147 = vmatpush1.bf16.msra.mxu0 0
        %1148 = vmatprep.subr.bf16.mxu0 0
        %1149 = vmatpush1.bf16.msra.mxu0 0
        %1150 = vmatprep.subr.bf16.mxu0 0
        %1151 = vmatpush1.bf16.msra.mxu0 0
        %1152 = vmatprep.subr.bf16.mxu0 0
        %1153 = vmatpush1.bf16.msra.mxu0 0
        %1154 = vmatprep.subr.bf16.mxu0 0
        %1155 = vmatpush1.bf16.msra.mxu0 0
        %1156 = vmatprep.subr.bf16.mxu0 0
        %1157 = vmatpush1.bf16.msra.mxu0 0
        %1158 = vmatprep.subr.bf16.mxu0 0
        %1159 = vmatpush1.bf16.msra.mxu0 0
        %1160 = vmatprep.subr.bf16.mxu0 0
        %1161 = vmatpush1.bf16.msra.mxu0 0
        %1162 = vmatprep.subr.bf16.mxu0 0
        %1163 = vmatpush1.bf16.msra.mxu0 0
        %1164 = vmatprep.subr.bf16.mxu0 0
        %1165 = vmatpush1.bf16.msra.mxu0 0
        %1166 = vmatprep.subr.bf16.mxu0 0
        %1167 = vmatpush1.bf16.msra.mxu0 0
        %1168 = vmatprep.subr.bf16.mxu0 0
        %1169 = vmatpush1.bf16.msra.mxu0 0
        %1170 = vmatprep.subr.bf16.mxu0 0
        %1171 = vmatpush1.bf16.msra.mxu0 0
        %1172 = vmatprep.subr.bf16.mxu0 0
        %1173 = vmatpush1.bf16.msra.mxu0 0
        %1174 = vmatprep.mubr.bf16.mxu0 0
        %1175 = vmatmul.mubr.bf16.gmra.mrb[0].mxu0 %v1128
        %v1176 = vpop.f32.mrb[0].mxu0
        %v1177 = vadd.f32 %v1097, %v1176
        %v1178 = vpop.f32.mrb[0].mxu0
        %v1179 = vpop.f32.mrb[0].mxu0
        %v1180 = vadd.f32 %v1100, %v1179
        %v1181 = vpop.f32.mrb[0].mxu0
        %1182 = vmatprep.mubr.bf16.mxu0 0
        %1183 = vmatmul.mubr.bf16.gmra.mrb[0].mxu0 %v1131
        %v1184 = vpop.f32.mrb[0].mxu0
        %v1185 = vadd.f32 %v1105, %v1184
        %v1186 = vpop.f32.mrb[0].mxu0
        %v1187 = vpop.f32.mrb[0].mxu0
        %v1188 = vadd.f32 %v1108, %v1187
        %v1189 = vpop.f32.mrb[0].mxu0
        %1190 = vmatprep.mubr.bf16.mxu0 0
        %1191 = vmatmul.mubr.bf16.gmra.mrb[0].mxu0 %v1134
        %v1192 = vpop.f32.mrb[0].mxu0
        %v1193 = vadd.f32 %v1113, %v1192
        %v1194 = vpop.f32.mrb[0].mxu0
        %v1195 = vpop.f32.mrb[0].mxu0
        %v1196 = vadd.f32 %v1116, %v1195
        %v1197 = vpop.f32.mrb[0].mxu0
        %1198 = vmatprep.mubr.bf16.mxu0 0
        %1199 = vmatmul.mubr.bf16.gmra.mrb[0].mxu0 %v1137
        %v1200 = vpop.f32.mrb[0].mxu0
        %v1201 = vadd.f32 %v1121, %v1200
        %v1202 = vpop.f32.mrb[0].mxu0
        %v1203 = vpop.f32.mrb[0].mxu0
        %v1204 = vadd.f32 %v1124, %v1203
        %v1205 = vpop.f32.mrb[0].mxu0
        %1206 = vdwg.mxu0
        %v1207 = vld [vmem:[#allocation4 + $0x2] sm:$0xff]
        %v1208 = vld [vmem:[#allocation4 + $0x12] sm:$0xff]
        %v1209 = vld [vmem:[#allocation4 + $0x22] sm:$0xff]
        %v1210 = vld [vmem:[#allocation4 + $0x32] sm:$0xff]
        %v1211 = vld [vmem:[#allocation4 + $0x42] sm:$0xff]
        %v1212 = vld [vmem:[#allocation4 + $0x52] sm:$0xff]
        %v1213 = vld [vmem:[#allocation4 + $0x62] sm:$0xff]
        %v1214 = vld [vmem:[#allocation4 + $0x72] sm:$0xff]
        %v1215 = vpack.c.bf16 %v1208, %v1207
        %v1216 = vpack.c.bf16 %v1210, %v1209
        %v1217 = vpack.c.bf16 %v1212, %v1211
        %v1218 = vpack.c.bf16 %v1214, %v1213
        %s1219 = scalar_lea.vmem %s350, 4
        %v1220 = vld [vmem:[%s1219] sm:$0x3]
        %v1222 = vsel %vm1010, %v1215, 0
        %v1225 = vsel %vm1010, %v1216, 0
        %v1228 = vsel %vm1010, %v1217, 0
        %v1231 = vsel %vm1010, %v1218, 0
        %v1234 = vsel %vm1058, %v1220, 0
        %1236 = vmatprep.subr.bf16.mxu0 0
        %1237 = vmatpush1.bf16.msra.mxu0 %v1234
        %1238 = vmatprep.subr.bf16.mxu0 0
        %1239 = vmatpush1.bf16.msra.mxu0 0
        %1240 = vmatprep.subr.bf16.mxu0 0
        %1241 = vmatpush1.bf16.msra.mxu0 0
        %1242 = vmatprep.subr.bf16.mxu0 0
        %1243 = vmatpush1.bf16.msra.mxu0 0
        %1244 = vmatprep.subr.bf16.mxu0 0
        %1245 = vmatpush1.bf16.msra.mxu0 0
        %1246 = vmatprep.subr.bf16.mxu0 0
        %1247 = vmatpush1.bf16.msra.mxu0 0
        %1248 = vmatprep.subr.bf16.mxu0 0
        %1249 = vmatpush1.bf16.msra.mxu0 0
        %1250 = vmatprep.subr.bf16.mxu0 0
        %1251 = vmatpush1.bf16.msra.mxu0 0
        %1252 = vmatprep.subr.bf16.mxu0 0
        %1253 = vmatpush1.bf16.msra.mxu0 0
        %1254 = vmatprep.subr.bf16.mxu0 0
        %1255 = vmatpush1.bf16.msra.mxu0 0
        %1256 = vmatprep.subr.bf16.mxu0 0
        %1257 = vmatpush1.bf16.msra.mxu0 0
        %1258 = vmatprep.subr.bf16.mxu0 0
        %1259 = vmatpush1.bf16.msra.mxu0 0
        %1260 = vmatprep.subr.bf16.mxu0 0
        %1261 = vmatpush1.bf16.msra.mxu0 0
        %1262 = vmatprep.subr.bf16.mxu0 0
        %1263 = vmatpush1.bf16.msra.mxu0 0
        %1264 = vmatprep.subr.bf16.mxu0 0
        %1265 = vmatpush1.bf16.msra.mxu0 0
        %1266 = vmatprep.subr.bf16.mxu0 0
        %1267 = vmatpush1.bf16.msra.mxu0 0
        %1268 = vmatprep.mubr.bf16.mxu0 0
        %1269 = vmatmul.mubr.bf16.gmra.mrb[0].mxu0 %v1222
        %v1270 = vpop.f32.mrb[0].mxu0
        %v1271 = vadd.f32 0.0, %v1270
        %v1272 = vpop.f32.mrb[0].mxu0
        %v1273 = vpop.f32.mrb[0].mxu0
        %v1274 = vadd.f32 0.0, %v1273
        %v1275 = vpop.f32.mrb[0].mxu0
        %1276 = vmatprep.mubr.bf16.mxu0 0
        %1277 = vmatmul.mubr.bf16.gmra.mrb[0].mxu0 %v1225
        %v1278 = vpop.f32.mrb[0].mxu0
        %v1279 = vadd.f32 0.0, %v1278
        %v1280 = vpop.f32.mrb[0].mxu0
        %v1281 = vpop.f32.mrb[0].mxu0
        %v1282 = vadd.f32 0.0, %v1281
        %v1283 = vpop.f32.mrb[0].mxu0
        %1284 = vmatprep.mubr.bf16.mxu0 0
        %1285 = vmatmul.mubr.bf16.gmra.mrb[0].mxu0 %v1228
        %v1286 = vpop.f32.mrb[0].mxu0
        %v1287 = vadd.f32 0.0, %v1286
        %v1288 = vpop.f32.mrb[0].mxu0
        %v1289 = vpop.f32.mrb[0].mxu0
        %v1290 = vadd.f32 0.0, %v1289
        %v1291 = vpop.f32.mrb[0].mxu0
        %1292 = vmatprep.mubr.bf16.mxu0 0
        %1293 = vmatmul.mubr.bf16.gmra.mrb[0].mxu0 %v1231
        %v1294 = vpop.f32.mrb[0].mxu0
        %v1295 = vadd.f32 0.0, %v1294
        %v1296 = vpop.f32.mrb[0].mxu0
        %v1297 = vpop.f32.mrb[0].mxu0
        %v1298 = vadd.f32 0.0, %v1297
        %v1299 = vpop.f32.mrb[0].mxu0
        %1300 = vdwg.mxu0
        %v1301 = vadd.f32 %v1177, %v1271
        %v1302 = vadd.f32 %v1180, %v1274
        %v1303 = vadd.f32 %v1185, %v1279
        %v1304 = vadd.f32 %v1188, %v1282
        %v1305 = vadd.f32 %v1193, %v1287
        %v1306 = vadd.f32 %v1196, %v1290
        %v1307 = vadd.f32 %v1201, %v1295
        %v1308 = vadd.f32 %v1204, %v1298
        %v1309 = vld [vmem:[%s1009] sm:$0xff]
        %v1310 = vld [vmem:[%s1009 + $0x10] sm:$0xff]
        %v1311 = vld [vmem:[%s1009 + $0x20] sm:$0xff]
        %v1312 = vld [vmem:[%s1009 + $0x30] sm:$0xff]
        %v1313 = vld [vmem:[%s1009 + $0x40] sm:$0xff]
        %v1314 = vld [vmem:[%s1009 + $0x50] sm:$0xff]
        %v1315 = vld [vmem:[%s1009 + $0x60] sm:$0xff]
        %v1316 = vld [vmem:[%s1009 + $0x70] sm:$0xff]
        %v1317 = vpack.c.bf16 %v1310, %v1309
        %v1318 = vpack.c.bf16 %v1312, %v1311
        %v1319 = vpack.c.bf16 %v1314, %v1313
        %v1320 = vpack.c.bf16 %v1316, %v1315
        %s1321 = scalar_lea.vmem %s350, 6
        %v1322 = vld [vmem:[%s1321] sm:$0x3]
        %v1324 = vsel %vm1010, %v1317, 0
        %v1327 = vsel %vm1010, %v1318, 0
        %v1330 = vsel %vm1010, %v1319, 0
        %v1333 = vsel %vm1010, %v1320, 0
        %v1336 = vsel %vm1058, %v1322, 0
        %1338 = vmatprep.subr.bf16.mxu0 0
        %1339 = vmatpush1.bf16.msra.mxu0 %v1336
        %1340 = vmatprep.subr.bf16.mxu0 0
        %1341 = vmatpush1.bf16.msra.mxu0 0
        %1342 = vmatprep.subr.bf16.mxu0 0
        %1343 = vmatpush1.bf16.msra.mxu0 0
        %1344 = vmatprep.subr.bf16.mxu0 0
        %1345 = vmatpush1.bf16.msra.mxu0 0
        %1346 = vmatprep.subr.bf16.mxu0 0
        %1347 = vmatpush1.bf16.msra.mxu0 0
        %1348 = vmatprep.subr.bf16.mxu0 0
        %1349 = vmatpush1.bf16.msra.mxu0 0
        %1350 = vmatprep.subr.bf16.mxu0 0
        %1351 = vmatpush1.bf16.msra.mxu0 0
        %1352 = vmatprep.subr.bf16.mxu0 0
        %1353 = vmatpush1.bf16.msra.mxu0 0
        %1354 = vmatprep.subr.bf16.mxu0 0
        %1355 = vmatpush1.bf16.msra.mxu0 0
        %1356 = vmatprep.subr.bf16.mxu0 0
        %1357 = vmatpush1.bf16.msra.mxu0 0
        %1358 = vmatprep.subr.bf16.mxu0 0
        %1359 = vmatpush1.bf16.msra.mxu0 0
        %1360 = vmatprep.subr.bf16.mxu0 0
        %1361 = vmatpush1.bf16.msra.mxu0 0
        %1362 = vmatprep.subr.bf16.mxu0 0
        %1363 = vmatpush1.bf16.msra.mxu0 0
        %1364 = vmatprep.subr.bf16.mxu0 0
        %1365 = vmatpush1.bf16.msra.mxu0 0
        %1366 = vmatprep.subr.bf16.mxu0 0
        %1367 = vmatpush1.bf16.msra.mxu0 0
        %1368 = vmatprep.subr.bf16.mxu0 0
        %1369 = vmatpush1.bf16.msra.mxu0 0
        %1370 = vmatprep.mubr.bf16.mxu0 0
        %1371 = vmatmul.mubr.bf16.gmra.mrb[0].mxu0 %v1324
        %v1372 = vpop.f32.mrb[0].mxu0
        %v1373 = vadd.f32 0.0, %v1372
        %v1374 = vpop.f32.mrb[0].mxu0
        %v1375 = vpop.f32.mrb[0].mxu0
        %v1376 = vadd.f32 0.0, %v1375
        %v1377 = vpop.f32.mrb[0].mxu0
        %1378 = vmatprep.mubr.bf16.mxu0 0
        %1379 = vmatmul.mubr.bf16.gmra.mrb[0].mxu0 %v1327
        %v1380 = vpop.f32.mrb[0].mxu0
        %v1381 = vadd.f32 0.0, %v1380
        %v1382 = vpop.f32.mrb[0].mxu0
        %v1383 = vpop.f32.mrb[0].mxu0
        %v1384 = vadd.f32 0.0, %v1383
        %v1385 = vpop.f32.mrb[0].mxu0
        %1386 = vmatprep.mubr.bf16.mxu0 0
        %1387 = vmatmul.mubr.bf16.gmra.mrb[0].mxu0 %v1330
        %v1388 = vpop.f32.mrb[0].mxu0
        %v1389 = vadd.f32 0.0, %v1388
        %v1390 = vpop.f32.mrb[0].mxu0
        %v1391 = vpop.f32.mrb[0].mxu0
        %v1392 = vadd.f32 0.0, %v1391
        %v1393 = vpop.f32.mrb[0].mxu0
        %1394 = vmatprep.mubr.bf16.mxu0 0
        %1395 = vmatmul.mubr.bf16.gmra.mrb[0].mxu0 %v1333
        %v1396 = vpop.f32.mrb[0].mxu0
        %v1397 = vadd.f32 0.0, %v1396
        %v1398 = vpop.f32.mrb[0].mxu0
        %v1399 = vpop.f32.mrb[0].mxu0
        %v1400 = vadd.f32 0.0, %v1399
        %v1401 = vpop.f32.mrb[0].mxu0
        %1402 = vdwg.mxu0
        %v1403 = vadd.f32 %v1301, %v1373
        %v1404 = vadd.f32 %v1302, %v1376
        %v1405 = vadd.f32 %v1303, %v1381
        %v1406 = vadd.f32 %v1304, %v1384
        %v1407 = vadd.f32 %v1305, %v1389
        %v1408 = vadd.f32 %v1306, %v1392
        %v1409 = vadd.f32 %v1307, %v1397
        %v1410 = vadd.f32 %v1308, %v1400
        %v1411 = vld [vmem:[%s1009 + $0x1] sm:$0xff]
        %v1412 = vld [vmem:[%s1009 + $0x11] sm:$0xff]
        %v1413 = vld [vmem:[%s1009 + $0x21] sm:$0xff]
        %v1414 = vld [vmem:[%s1009 + $0x31] sm:$0xff]
        %v1415 = vld [vmem:[%s1009 + $0x41] sm:$0xff]
        %v1416 = vld [vmem:[%s1009 + $0x51] sm:$0xff]
        %v1417 = vld [vmem:[%s1009 + $0x61] sm:$0xff]
        %v1418 = vld [vmem:[%s1009 + $0x71] sm:$0xff]
        %v1419 = vpack.c.bf16 %v1412, %v1411
        %v1420 = vpack.c.bf16 %v1414, %v1413
        %v1421 = vpack.c.bf16 %v1416, %v1415
        %v1422 = vpack.c.bf16 %v1418, %v1417
        %s1423 = scalar_lea.vmem %s350, 8
        %v1424 = vld [vmem:[%s1423] sm:$0x3]
        %v1426 = vsel %vm1010, %v1419, 0
        %v1429 = vsel %vm1010, %v1420, 0
        %v1432 = vsel %vm1010, %v1421, 0
        %v1435 = vsel %vm1010, %v1422, 0
        %v1438 = vsel %vm1058, %v1424, 0
        %1440 = vmatprep.subr.bf16.mxu0 0
        %1441 = vmatpush1.bf16.msra.mxu0 %v1438
        %1442 = vmatprep.subr.bf16.mxu0 0
        %1443 = vmatpush1.bf16.msra.mxu0 0
        %1444 = vmatprep.subr.bf16.mxu0 0
        %1445 = vmatpush1.bf16.msra.mxu0 0
        %1446 = vmatprep.subr.bf16.mxu0 0
        %1447 = vmatpush1.bf16.msra.mxu0 0
        %1448 = vmatprep.subr.bf16.mxu0 0
        %1449 = vmatpush1.bf16.msra.mxu0 0
        %1450 = vmatprep.subr.bf16.mxu0 0
        %1451 = vmatpush1.bf16.msra.mxu0 0
        %1452 = vmatprep.subr.bf16.mxu0 0
        %1453 = vmatpush1.bf16.msra.mxu0 0
        %1454 = vmatprep.subr.bf16.mxu0 0
        %1455 = vmatpush1.bf16.msra.mxu0 0
        %1456 = vmatprep.subr.bf16.mxu0 0
        %1457 = vmatpush1.bf16.msra.mxu0 0
        %1458 = vmatprep.subr.bf16.mxu0 0
        %1459 = vmatpush1.bf16.msra.mxu0 0
        %1460 = vmatprep.subr.bf16.mxu0 0
        %1461 = vmatpush1.bf16.msra.mxu0 0
        %1462 = vmatprep.subr.bf16.mxu0 0
        %1463 = vmatpush1.bf16.msra.mxu0 0
        %1464 = vmatprep.subr.bf16.mxu0 0
        %1465 = vmatpush1.bf16.msra.mxu0 0
        %1466 = vmatprep.subr.bf16.mxu0 0
        %1467 = vmatpush1.bf16.msra.mxu0 0
        %1468 = vmatprep.subr.bf16.mxu0 0
        %1469 = vmatpush1.bf16.msra.mxu0 0
        %1470 = vmatprep.subr.bf16.mxu0 0
        %1471 = vmatpush1.bf16.msra.mxu0 0
        %1472 = vmatprep.mubr.bf16.mxu0 0
        %1473 = vmatmul.mubr.bf16.gmra.mrb[0].mxu0 %v1426
        %v1474 = vpop.f32.mrb[0].mxu0
        %v1475 = vadd.f32 0.0, %v1474
        %v1476 = vpop.f32.mrb[0].mxu0
        %v1477 = vpop.f32.mrb[0].mxu0
        %v1478 = vadd.f32 0.0, %v1477
        %v1479 = vpop.f32.mrb[0].mxu0
        %1480 = vmatprep.mubr.bf16.mxu0 0
        %1481 = vmatmul.mubr.bf16.gmra.mrb[0].mxu0 %v1429
        %v1482 = vpop.f32.mrb[0].mxu0
        %v1483 = vadd.f32 0.0, %v1482
        %v1484 = vpop.f32.mrb[0].mxu0
        %v1485 = vpop.f32.mrb[0].mxu0
        %v1486 = vadd.f32 0.0, %v1485
        %v1487 = vpop.f32.mrb[0].mxu0
        %1488 = vmatprep.mubr.bf16.mxu0 0
        %1489 = vmatmul.mubr.bf16.gmra.mrb[0].mxu0 %v1432
        %v1490 = vpop.f32.mrb[0].mxu0
        %v1491 = vadd.f32 0.0, %v1490
        %v1492 = vpop.f32.mrb[0].mxu0
        %v1493 = vpop.f32.mrb[0].mxu0
        %v1494 = vadd.f32 0.0, %v1493
        %v1495 = vpop.f32.mrb[0].mxu0
        %1496 = vmatprep.mubr.bf16.mxu0 0
        %1497 = vmatmul.mubr.bf16.gmra.mrb[0].mxu0 %v1435
        %v1498 = vpop.f32.mrb[0].mxu0
        %v1499 = vadd.f32 0.0, %v1498
        %v1500 = vpop.f32.mrb[0].mxu0
        %v1501 = vpop.f32.mrb[0].mxu0
        %v1502 = vadd.f32 0.0, %v1501
        %v1503 = vpop.f32.mrb[0].mxu0
        %1504 = vdwg.mxu0
        %v1505 = vadd.f32 %v1403, %v1475
        %v1506 = vadd.f32 %v1404, %v1478
        %v1507 = vadd.f32 %v1405, %v1483
        %v1508 = vadd.f32 %v1406, %v1486
        %v1509 = vadd.f32 %v1407, %v1491
        %v1510 = vadd.f32 %v1408, %v1494
        %v1511 = vadd.f32 %v1409, %v1499
        %v1512 = vadd.f32 %v1410, %v1502
        %v1513 = vld [vmem:[%s1009 + $0x2] sm:$0xff]
        %v1514 = vld [vmem:[%s1009 + $0x12] sm:$0xff]
        %v1515 = vld [vmem:[%s1009 + $0x22] sm:$0xff]
        %v1516 = vld [vmem:[%s1009 + $0x32] sm:$0xff]
        %v1517 = vld [vmem:[%s1009 + $0x42] sm:$0xff]
        %v1518 = vld [vmem:[%s1009 + $0x52] sm:$0xff]
        %v1519 = vld [vmem:[%s1009 + $0x62] sm:$0xff]
        %v1520 = vld [vmem:[%s1009 + $0x72] sm:$0xff]
        %v1521 = vpack.c.bf16 %v1514, %v1513
        %v1522 = vpack.c.bf16 %v1516, %v1515
        %v1523 = vpack.c.bf16 %v1518, %v1517
        %v1524 = vpack.c.bf16 %v1520, %v1519
        %s1525 = scalar_lea.vmem %s350, 10
        %v1526 = vld [vmem:[%s1525] sm:$0x3]
        %v1528 = vsel %vm1010, %v1521, 0
        %v1531 = vsel %vm1010, %v1522, 0
        %v1534 = vsel %vm1010, %v1523, 0
        %v1537 = vsel %vm1010, %v1524, 0
        %v1540 = vsel %vm1058, %v1526, 0
        %1542 = vmatprep.subr.bf16.mxu0 0
        %1543 = vmatpush1.bf16.msra.mxu0 %v1540
        %1544 = vmatprep.subr.bf16.mxu0 0
        %1545 = vmatpush1.bf16.msra.mxu0 0
        %1546 = vmatprep.subr.bf16.mxu0 0
        %1547 = vmatpush1.bf16.msra.mxu0 0
        %1548 = vmatprep.subr.bf16.mxu0 0
        %1549 = vmatpush1.bf16.msra.mxu0 0
        %1550 = vmatprep.subr.bf16.mxu0 0
        %1551 = vmatpush1.bf16.msra.mxu0 0
        %1552 = vmatprep.subr.bf16.mxu0 0
        %1553 = vmatpush1.bf16.msra.mxu0 0
        %1554 = vmatprep.subr.bf16.mxu0 0
        %1555 = vmatpush1.bf16.msra.mxu0 0
        %1556 = vmatprep.subr.bf16.mxu0 0
        %1557 = vmatpush1.bf16.msra.mxu0 0
        %1558 = vmatprep.subr.bf16.mxu0 0
        %1559 = vmatpush1.bf16.msra.mxu0 0
        %1560 = vmatprep.subr.bf16.mxu0 0
        %1561 = vmatpush1.bf16.msra.mxu0 0
        %1562 = vmatprep.subr.bf16.mxu0 0
        %1563 = vmatpush1.bf16.msra.mxu0 0
        %1564 = vmatprep.subr.bf16.mxu0 0
        %1565 = vmatpush1.bf16.msra.mxu0 0
        %1566 = vmatprep.subr.bf16.mxu0 0
        %1567 = vmatpush1.bf16.msra.mxu0 0
        %1568 = vmatprep.subr.bf16.mxu0 0
        %1569 = vmatpush1.bf16.msra.mxu0 0
        %1570 = vmatprep.subr.bf16.mxu0 0
        %1571 = vmatpush1.bf16.msra.mxu0 0
        %1572 = vmatprep.subr.bf16.mxu0 0
        %1573 = vmatpush1.bf16.msra.mxu0 0
        %1574 = vmatprep.mubr.bf16.mxu0 0
        %1575 = vmatmul.mubr.bf16.gmra.mrb[0].mxu0 %v1528
        %v1576 = vpop.f32.mrb[0].mxu0
        %v1577 = vadd.f32 0.0, %v1576
        %v1578 = vpop.f32.mrb[0].mxu0
        %v1579 = vpop.f32.mrb[0].mxu0
        %v1580 = vadd.f32 0.0, %v1579
        %v1581 = vpop.f32.mrb[0].mxu0
        %1582 = vmatprep.mubr.bf16.mxu0 0
        %1583 = vmatmul.mubr.bf16.gmra.mrb[0].mxu0 %v1531
        %v1584 = vpop.f32.mrb[0].mxu0
        %v1585 = vadd.f32 0.0, %v1584
        %v1586 = vpop.f32.mrb[0].mxu0
        %v1587 = vpop.f32.mrb[0].mxu0
        %v1588 = vadd.f32 0.0, %v1587
        %v1589 = vpop.f32.mrb[0].mxu0
        %1590 = vmatprep.mubr.bf16.mxu0 0
        %1591 = vmatmul.mubr.bf16.gmra.mrb[0].mxu0 %v1534
        %v1592 = vpop.f32.mrb[0].mxu0
        %v1593 = vadd.f32 0.0, %v1592
        %v1594 = vpop.f32.mrb[0].mxu0
        %v1595 = vpop.f32.mrb[0].mxu0
        %v1596 = vadd.f32 0.0, %v1595
        %v1597 = vpop.f32.mrb[0].mxu0
        %1598 = vmatprep.mubr.bf16.mxu0 0
        %1599 = vmatmul.mubr.bf16.gmra.mrb[0].mxu0 %v1537
        %v1600 = vpop.f32.mrb[0].mxu0
        %v1601 = vadd.f32 0.0, %v1600
        %v1602 = vpop.f32.mrb[0].mxu0
        %v1603 = vpop.f32.mrb[0].mxu0
        %v1604 = vadd.f32 0.0, %v1603
        %v1605 = vpop.f32.mrb[0].mxu0
        %1606 = vdwg.mxu0
        %v1607 = vadd.f32 %v1505, %v1577
        %v1608 = vadd.f32 %v1506, %v1580
        %v1609 = vadd.f32 %v1507, %v1585
        %v1610 = vadd.f32 %v1508, %v1588
        %v1611 = vadd.f32 %v1509, %v1593
        %v1612 = vadd.f32 %v1510, %v1596
        %v1613 = vadd.f32 %v1511, %v1601
        %v1614 = vadd.f32 %v1512, %v1604
        %s1615 = scalar_lea.vmem [#allocation4], 32
        %v1616 = vld [vmem:[%s1615] sm:$0xff]
        %v1617 = vld [vmem:[%s1615 + $0x10] sm:$0xff]
        %v1618 = vld [vmem:[%s1615 + $0x20] sm:$0xff]
        %v1619 = vld [vmem:[%s1615 + $0x30] sm:$0xff]
        %v1620 = vld [vmem:[%s1615 + $0x40] sm:$0xff]
        %v1621 = vld [vmem:[%s1615 + $0x50] sm:$0xff]
        %v1622 = vld [vmem:[%s1615 + $0x60] sm:$0xff]
        %v1623 = vld [vmem:[%s1615 + $0x70] sm:$0xff]
        %v1624 = vpack.c.bf16 %v1617, %v1616
        %v1625 = vpack.c.bf16 %v1619, %v1618
        %v1626 = vpack.c.bf16 %v1621, %v1620
        %v1627 = vpack.c.bf16 %v1623, %v1622
        %s1628 = scalar_lea.vmem %s350, 12
        %v1629 = vld [vmem:[%s1628] sm:$0x3]
        %v1631 = vsel %vm1010, %v1624, 0
        %v1634 = vsel %vm1010, %v1625, 0
        %v1637 = vsel %vm1010, %v1626, 0
        %v1640 = vsel %vm1010, %v1627, 0
        %v1643 = vsel %vm1058, %v1629, 0
        %1645 = vmatprep.subr.bf16.mxu0 0
        %1646 = vmatpush1.bf16.msra.mxu0 %v1643
        %1647 = vmatprep.subr.bf16.mxu0 0
        %1648 = vmatpush1.bf16.msra.mxu0 0
        %1649 = vmatprep.subr.bf16.mxu0 0
        %1650 = vmatpush1.bf16.msra.mxu0 0
        %1651 = vmatprep.subr.bf16.mxu0 0
        %1652 = vmatpush1.bf16.msra.mxu0 0
        %1653 = vmatprep.subr.bf16.mxu0 0
        %1654 = vmatpush1.bf16.msra.mxu0 0
        %1655 = vmatprep.subr.bf16.mxu0 0
        %1656 = vmatpush1.bf16.msra.mxu0 0
        %1657 = vmatprep.subr.bf16.mxu0 0
        %1658 = vmatpush1.bf16.msra.mxu0 0
        %1659 = vmatprep.subr.bf16.mxu0 0
        %1660 = vmatpush1.bf16.msra.mxu0 0
        %1661 = vmatprep.subr.bf16.mxu0 0
        %1662 = vmatpush1.bf16.msra.mxu0 0
        %1663 = vmatprep.subr.bf16.mxu0 0
        %1664 = vmatpush1.bf16.msra.mxu0 0
        %1665 = vmatprep.subr.bf16.mxu0 0
        %1666 = vmatpush1.bf16.msra.mxu0 0
        %1667 = vmatprep.subr.bf16.mxu0 0
        %1668 = vmatpush1.bf16.msra.mxu0 0
        %1669 = vmatprep.subr.bf16.mxu0 0
        %1670 = vmatpush1.bf16.msra.mxu0 0
        %1671 = vmatprep.subr.bf16.mxu0 0
        %1672 = vmatpush1.bf16.msra.mxu0 0
        %1673 = vmatprep.subr.bf16.mxu0 0
        %1674 = vmatpush1.bf16.msra.mxu0 0
        %1675 = vmatprep.subr.bf16.mxu0 0
        %1676 = vmatpush1.bf16.msra.mxu0 0
        %1677 = vmatprep.mubr.bf16.mxu0 0
        %1678 = vmatmul.mubr.bf16.gmra.mrb[0].mxu0 %v1631
        %v1679 = vpop.f32.mrb[0].mxu0
        %v1680 = vadd.f32 0.0, %v1679
        %v1681 = vpop.f32.mrb[0].mxu0
        %v1682 = vpop.f32.mrb[0].mxu0
        %v1683 = vadd.f32 0.0, %v1682
        %v1684 = vpop.f32.mrb[0].mxu0
        %1685 = vmatprep.mubr.bf16.mxu0 0
        %1686 = vmatmul.mubr.bf16.gmra.mrb[0].mxu0 %v1634
        %v1687 = vpop.f32.mrb[0].mxu0
        %v1688 = vadd.f32 0.0, %v1687
        %v1689 = vpop.f32.mrb[0].mxu0
        %v1690 = vpop.f32.mrb[0].mxu0
        %v1691 = vadd.f32 0.0, %v1690
        %v1692 = vpop.f32.mrb[0].mxu0
        %1693 = vmatprep.mubr.bf16.mxu0 0
        %1694 = vmatmul.mubr.bf16.gmra.mrb[0].mxu0 %v1637
        %v1695 = vpop.f32.mrb[0].mxu0
        %v1696 = vadd.f32 0.0, %v1695
        %v1697 = vpop.f32.mrb[0].mxu0
        %v1698 = vpop.f32.mrb[0].mxu0
        %v1699 = vadd.f32 0.0, %v1698
        %v1700 = vpop.f32.mrb[0].mxu0
        %1701 = vmatprep.mubr.bf16.mxu0 0
        %1702 = vmatmul.mubr.bf16.gmra.mrb[0].mxu0 %v1640
        %v1703 = vpop.f32.mrb[0].mxu0
        %v1704 = vadd.f32 0.0, %v1703
        %v1705 = vpop.f32.mrb[0].mxu0
        %v1706 = vpop.f32.mrb[0].mxu0
        %v1707 = vadd.f32 0.0, %v1706
        %v1708 = vpop.f32.mrb[0].mxu0
        %1709 = vdwg.mxu0
        %v1710 = vadd.f32 %v1607, %v1680
        %v1711 = vadd.f32 %v1608, %v1683
        %v1712 = vadd.f32 %v1609, %v1688
        %v1713 = vadd.f32 %v1610, %v1691
        %v1714 = vadd.f32 %v1611, %v1696
        %v1715 = vadd.f32 %v1612, %v1699
        %v1716 = vadd.f32 %v1613, %v1704
        %v1717 = vadd.f32 %v1614, %v1707
        %v1718 = vld [vmem:[%s1615 + $0x1] sm:$0xff]
        %v1719 = vld [vmem:[%s1615 + $0x11] sm:$0xff]
        %v1720 = vld [vmem:[%s1615 + $0x21] sm:$0xff]
        %v1721 = vld [vmem:[%s1615 + $0x31] sm:$0xff]
        %v1722 = vld [vmem:[%s1615 + $0x41] sm:$0xff]
        %v1723 = vld [vmem:[%s1615 + $0x51] sm:$0xff]
        %v1724 = vld [vmem:[%s1615 + $0x61] sm:$0xff]
        %v1725 = vld [vmem:[%s1615 + $0x71] sm:$0xff]
        %v1726 = vpack.c.bf16 %v1719, %v1718
        %v1727 = vpack.c.bf16 %v1721, %v1720
        %v1728 = vpack.c.bf16 %v1723, %v1722
        %v1729 = vpack.c.bf16 %v1725, %v1724
        %s1730 = scalar_lea.vmem %s350, 14
        %v1731 = vld [vmem:[%s1730] sm:$0x3]
        %v1733 = vsel %vm1010, %v1726, 0
        %v1736 = vsel %vm1010, %v1727, 0
        %v1739 = vsel %vm1010, %v1728, 0
        %v1742 = vsel %vm1010, %v1729, 0
        %v1745 = vsel %vm1058, %v1731, 0
        %1747 = vmatprep.subr.bf16.mxu0 0
        %1748 = vmatpush1.bf16.msra.mxu0 %v1745
        %1749 = vmatprep.subr.bf16.mxu0 0
        %1750 = vmatpush1.bf16.msra.mxu0 0
        %1751 = vmatprep.subr.bf16.mxu0 0
        %1752 = vmatpush1.bf16.msra.mxu0 0
        %1753 = vmatprep.subr.bf16.mxu0 0
        %1754 = vmatpush1.bf16.msra.mxu0 0
        %1755 = vmatprep.subr.bf16.mxu0 0
        %1756 = vmatpush1.bf16.msra.mxu0 0
        %1757 = vmatprep.subr.bf16.mxu0 0
        %1758 = vmatpush1.bf16.msra.mxu0 0
        %1759 = vmatprep.subr.bf16.mxu0 0
        %1760 = vmatpush1.bf16.msra.mxu0 0
        %1761 = vmatprep.subr.bf16.mxu0 0
        %1762 = vmatpush1.bf16.msra.mxu0 0
        %1763 = vmatprep.subr.bf16.mxu0 0
        %1764 = vmatpush1.bf16.msra.mxu0 0
        %1765 = vmatprep.subr.bf16.mxu0 0
        %1766 = vmatpush1.bf16.msra.mxu0 0
        %1767 = vmatprep.subr.bf16.mxu0 0
        %1768 = vmatpush1.bf16.msra.mxu0 0
        %1769 = vmatprep.subr.bf16.mxu0 0
        %1770 = vmatpush1.bf16.msra.mxu0 0
        %1771 = vmatprep.subr.bf16.mxu0 0
        %1772 = vmatpush1.bf16.msra.mxu0 0
        %1773 = vmatprep.subr.bf16.mxu0 0
        %1774 = vmatpush1.bf16.msra.mxu0 0
        %1775 = vmatprep.subr.bf16.mxu0 0
        %1776 = vmatpush1.bf16.msra.mxu0 0
        %1777 = vmatprep.subr.bf16.mxu0 0
        %1778 = vmatpush1.bf16.msra.mxu0 0
        %1779 = vmatprep.mubr.bf16.mxu0 0
        %1780 = vmatmul.mubr.bf16.gmra.mrb[0].mxu0 %v1733
        %v1781 = vpop.f32.mrb[0].mxu0
        %v1782 = vadd.f32 0.0, %v1781
        %v1783 = vpop.f32.mrb[0].mxu0
        %v1784 = vpop.f32.mrb[0].mxu0
        %v1785 = vadd.f32 0.0, %v1784
        %v1786 = vpop.f32.mrb[0].mxu0
        %1787 = vmatprep.mubr.bf16.mxu0 0
        %1788 = vmatmul.mubr.bf16.gmra.mrb[0].mxu0 %v1736
        %v1789 = vpop.f32.mrb[0].mxu0
        %v1790 = vadd.f32 0.0, %v1789
        %v1791 = vpop.f32.mrb[0].mxu0
        %v1792 = vpop.f32.mrb[0].mxu0
        %v1793 = vadd.f32 0.0, %v1792
        %v1794 = vpop.f32.mrb[0].mxu0
        %1795 = vmatprep.mubr.bf16.mxu0 0
        %1796 = vmatmul.mubr.bf16.gmra.mrb[0].mxu0 %v1739
        %v1797 = vpop.f32.mrb[0].mxu0
        %v1798 = vadd.f32 0.0, %v1797
        %v1799 = vpop.f32.mrb[0].mxu0
        %v1800 = vpop.f32.mrb[0].mxu0
        %v1801 = vadd.f32 0.0, %v1800
        %v1802 = vpop.f32.mrb[0].mxu0
        %1803 = vmatprep.mubr.bf16.mxu0 0
        %1804 = vmatmul.mubr.bf16.gmra.mrb[0].mxu0 %v1742
        %v1805 = vpop.f32.mrb[0].mxu0
        %v1806 = vadd.f32 0.0, %v1805
        %v1807 = vpop.f32.mrb[0].mxu0
        %v1808 = vpop.f32.mrb[0].mxu0
        %v1809 = vadd.f32 0.0, %v1808
        %v1810 = vpop.f32.mrb[0].mxu0
        %1811 = vdwg.mxu0
        %v1812 = vadd.f32 %v1710, %v1782
        %v1813 = vadd.f32 %v1711, %v1785
        %v1814 = vadd.f32 %v1712, %v1790
        %v1815 = vadd.f32 %v1713, %v1793
        %v1816 = vadd.f32 %v1714, %v1798
        %v1817 = vadd.f32 %v1715, %v1801
        %v1818 = vadd.f32 %v1716, %v1806
        %v1819 = vadd.f32 %v1717, %v1809
        %v1820 = vld [vmem:[%s1615 + $0x2] sm:$0xff]
        %v1821 = vld [vmem:[%s1615 + $0x12] sm:$0xff]
        %v1822 = vld [vmem:[%s1615 + $0x22] sm:$0xff]
        %v1823 = vld [vmem:[%s1615 + $0x32] sm:$0xff]
        %v1824 = vld [vmem:[%s1615 + $0x42] sm:$0xff]
        %v1825 = vld [vmem:[%s1615 + $0x52] sm:$0xff]
        %v1826 = vld [vmem:[%s1615 + $0x62] sm:$0xff]
        %v1827 = vld [vmem:[%s1615 + $0x72] sm:$0xff]
        %v1828 = vpack.c.bf16 %v1821, %v1820
        %v1829 = vpack.c.bf16 %v1823, %v1822
        %v1830 = vpack.c.bf16 %v1825, %v1824
        %v1831 = vpack.c.bf16 %v1827, %v1826
        %s1832 = scalar_lea.vmem %s350, 16
        %v1833 = vld [vmem:[%s1832] sm:$0x3]
        %v1835 = vsel %vm1010, %v1828, 0
        %v1838 = vsel %vm1010, %v1829, 0
        %v1841 = vsel %vm1010, %v1830, 0
        %v1844 = vsel %vm1010, %v1831, 0
        %v1847 = vsel %vm1058, %v1833, 0
        %1849 = vmatprep.subr.bf16.mxu0 0
        %1850 = vmatpush1.bf16.msra.mxu0 %v1847
        %1851 = vmatprep.subr.bf16.mxu0 0
        %1852 = vmatpush1.bf16.msra.mxu0 0
        %1853 = vmatprep.subr.bf16.mxu0 0
        %1854 = vmatpush1.bf16.msra.mxu0 0
        %1855 = vmatprep.subr.bf16.mxu0 0
        %1856 = vmatpush1.bf16.msra.mxu0 0
        %1857 = vmatprep.subr.bf16.mxu0 0
        %1858 = vmatpush1.bf16.msra.mxu0 0
        %1859 = vmatprep.subr.bf16.mxu0 0
        %1860 = vmatpush1.bf16.msra.mxu0 0
        %1861 = vmatprep.subr.bf16.mxu0 0
        %1862 = vmatpush1.bf16.msra.mxu0 0
        %1863 = vmatprep.subr.bf16.mxu0 0
        %1864 = vmatpush1.bf16.msra.mxu0 0
        %1865 = vmatprep.subr.bf16.mxu0 0
        %1866 = vmatpush1.bf16.msra.mxu0 0
        %1867 = vmatprep.subr.bf16.mxu0 0
        %1868 = vmatpush1.bf16.msra.mxu0 0
        %1869 = vmatprep.subr.bf16.mxu0 0
        %1870 = vmatpush1.bf16.msra.mxu0 0
        %1871 = vmatprep.subr.bf16.mxu0 0
        %1872 = vmatpush1.bf16.msra.mxu0 0
        %1873 = vmatprep.subr.bf16.mxu0 0
        %1874 = vmatpush1.bf16.msra.mxu0 0
        %1875 = vmatprep.subr.bf16.mxu0 0
        %1876 = vmatpush1.bf16.msra.mxu0 0
        %1877 = vmatprep.subr.bf16.mxu0 0
        %1878 = vmatpush1.bf16.msra.mxu0 0
        %1879 = vmatprep.subr.bf16.mxu0 0
        %1880 = vmatpush1.bf16.msra.mxu0 0
        %1881 = vmatprep.mubr.bf16.mxu0 0
        %1882 = vmatmul.mubr.bf16.gmra.mrb[0].mxu0 %v1835
        %v1883 = vpop.f32.mrb[0].mxu0
        %v1884 = vadd.f32 0.0, %v1883
        %v1885 = vpop.f32.mrb[0].mxu0
        %v1886 = vpop.f32.mrb[0].mxu0
        %v1887 = vadd.f32 0.0, %v1886
        %v1888 = vpop.f32.mrb[0].mxu0
        %1889 = vmatprep.mubr.bf16.mxu0 0
        %1890 = vmatmul.mubr.bf16.gmra.mrb[0].mxu0 %v1838
        %v1891 = vpop.f32.mrb[0].mxu0
        %v1892 = vadd.f32 0.0, %v1891
        %v1893 = vpop.f32.mrb[0].mxu0
        %v1894 = vpop.f32.mrb[0].mxu0
        %v1895 = vadd.f32 0.0, %v1894
        %v1896 = vpop.f32.mrb[0].mxu0
        %1897 = vmatprep.mubr.bf16.mxu0 0
        %1898 = vmatmul.mubr.bf16.gmra.mrb[0].mxu0 %v1841
        %v1899 = vpop.f32.mrb[0].mxu0
        %v1900 = vadd.f32 0.0, %v1899
        %v1901 = vpop.f32.mrb[0].mxu0
        %v1902 = vpop.f32.mrb[0].mxu0
        %v1903 = vadd.f32 0.0, %v1902
        %v1904 = vpop.f32.mrb[0].mxu0
        %1905 = vmatprep.mubr.bf16.mxu0 0
        %1906 = vmatmul.mubr.bf16.gmra.mrb[0].mxu0 %v1844
        %v1907 = vpop.f32.mrb[0].mxu0
        %v1908 = vadd.f32 0.0, %v1907
        %v1909 = vpop.f32.mrb[0].mxu0
        %v1910 = vpop.f32.mrb[0].mxu0
        %v1911 = vadd.f32 0.0, %v1910
        %v1912 = vpop.f32.mrb[0].mxu0
        %1913 = vdwg.mxu0
        %v1914 = vadd.f32 %v1812, %v1884
        %v1915 = vadd.f32 %v1813, %v1887
        %v1916 = vadd.f32 %v1814, %v1892
        %v1917 = vadd.f32 %v1815, %v1895
        %v1918 = vadd.f32 %v1816, %v1900
        %v1919 = vadd.f32 %v1817, %v1903
        %v1920 = vadd.f32 %v1818, %v1908
        %v1921 = vadd.f32 %v1819, %v1911
        %v1922 = vld [vmem:[%s353] sm:$0x1]
        %v1924 = vlaneseq
        %v1925 = vshrl.u32 %v1924, 7
        %v1926 = vsub.s32 0, %v1925
        %v1927 = vrot.slane %v1922, %v1926
        %v1929 = vadd.f32 %v1914, %v1927
        %v1930 = vadd.f32 %v1915, %v1927
        %v1931 = vadd.f32 %v1916, %v1927
        %v1932 = vadd.f32 %v1917, %v1927
        %v1933 = vadd.f32 %v1918, %v1927
        %v1934 = vadd.f32 %v1919, %v1927
        %v1935 = vadd.f32 %v1920, %v1927
        %v1936 = vadd.f32 %v1921, %v1927
        %v1937 = vmul.f32 %v1929, 0.1
        %v1938 = vmul.f32 %v1930, 0.1
        %v1939 = vmul.f32 %v1931, 0.1
        %v1940 = vmul.f32 %v1932, 0.1
        %v1941 = vmul.f32 %v1933, 0.1
        %v1942 = vmul.f32 %v1934, 0.1
        %v1943 = vmul.f32 %v1935, 0.1
        %v1944 = vmul.f32 %v1936, 0.1
        %v1945 = vmax.f32 %v1929, %v1937
        %v1946 = vmax.f32 %v1930, %v1938
        %v1947 = vmax.f32 %v1931, %v1939
        %v1948 = vmax.f32 %v1932, %v1940
        %v1949 = vmax.f32 %v1933, %v1941
        %v1950 = vmax.f32 %v1934, %v1942
        %v1951 = vmax.f32 %v1935, %v1943
        %v1952 = vmax.f32 %v1936, %v1944
        %v1953 = vld [vmem:[#allocation3] sm:$0xff]
        %v1954 = vld [vmem:[#allocation3 + $0x8] sm:$0xff]
        %v1955 = vld [vmem:[#allocation3 + $0x10] sm:$0xff]
        %v1956 = vld [vmem:[#allocation3 + $0x18] sm:$0xff]
        %v1957 = vld [vmem:[#allocation3 + $0x20] sm:$0xff]
        %v1958 = vld [vmem:[#allocation3 + $0x28] sm:$0xff]
        %v1959 = vld [vmem:[#allocation3 + $0x30] sm:$0xff]
        %v1960 = vld [vmem:[#allocation3 + $0x38] sm:$0xff]
        %v1961 = vadd.f32 %v1953, %v1945
        %v1962 = vadd.f32 %v1954, %v1946
        %v1963 = vadd.f32 %v1955, %v1947
        %v1964 = vadd.f32 %v1956, %v1948
        %v1965 = vadd.f32 %v1957, %v1949
        %v1966 = vadd.f32 %v1958, %v1950
        %v1967 = vadd.f32 %v1959, %v1951
        %v1968 = vadd.f32 %v1960, %v1952
        %1969 = vst.msk [vmem:[#allocation3] sm:$0xff] %vm911, %v1961
        %1970 = vst.msk [vmem:[#allocation3 + $0x8] sm:$0xff] %vm911, %v1962
        %1971 = vst.msk [vmem:[#allocation3 + $0x10] sm:$0xff] %vm911, %v1963
        %1972 = vst.msk [vmem:[#allocation3 + $0x18] sm:$0xff] %vm911, %v1964
        %1973 = vst.msk [vmem:[#allocation3 + $0x20] sm:$0xff] %vm911, %v1965
        %1974 = vst.msk [vmem:[#allocation3 + $0x28] sm:$0xff] %vm911, %v1966
        %1975 = vst.msk [vmem:[#allocation3 + $0x30] sm:$0xff] %vm911, %v1967
        %1976 = vst.msk [vmem:[#allocation3 + $0x38] sm:$0xff] %vm911, %v1968
        %p1977 = scmp.eq.s32.totalorder %s26, 1
        // Predicated region
        $region53: #{tpu_custom_call.1} parent=47 // pred_check
          %p1978 = pneg %p1977
        $region54: #{tpu_custom_call.1} parent=47 // pred_check_branch
          %1980 = sbr.rel (%p1978) target = $region56
        $region55: #{tpu_custom_call.1} parent=47 // pred_region
          %v1981 = vld [vmem:[#allocation3] sm:$0xff]
          %v1982 = vld [vmem:[#allocation3 + $0x8] sm:$0xff]
          %v1983 = vld [vmem:[#allocation3 + $0x10] sm:$0xff]
          %v1984 = vld [vmem:[#allocation3 + $0x18] sm:$0xff]
          %v1985 = vld [vmem:[#allocation3 + $0x20] sm:$0xff]
          %v1986 = vld [vmem:[#allocation3 + $0x28] sm:$0xff]
          %v1987 = vld [vmem:[#allocation3 + $0x30] sm:$0xff]
          %v1988 = vld [vmem:[#allocation3 + $0x38] sm:$0xff]
          %v1989 = vpack.c.bf16 %v1981, %v1981
          %v1990 = vpack.c.bf16 %v1982, %v1982
          %v1991 = vpack.c.bf16 %v1983, %v1983
          %v1992 = vpack.c.bf16 %v1984, %v1984
          %v1993 = vpack.c.bf16 %v1985, %v1985
          %v1994 = vpack.c.bf16 %v1986, %v1986
          %v1995 = vpack.c.bf16 %v1987, %v1987
          %v1996 = vpack.c.bf16 %v1988, %v1988
          %vm1997 = vcmask 60416
          %1998 = vst.msk [vmem:[%s333] sm:$0xf] %vm1997, %v1989
          %1999 = vst.msk [vmem:[%s333 + $0x4] sm:$0xf] %vm1997, %v1990
          %2000 = vst.msk [vmem:[%s333 + $0x8] sm:$0xf] %vm1997, %v1991
          %2001 = vst.msk [vmem:[%s333 + $0xc] sm:$0xf] %vm1997, %v1992
          %2002 = vst.msk [vmem:[%s333 + $0x10] sm:$0xf] %vm1997, %v1993
          %2003 = vst.msk [vmem:[%s333 + $0x14] sm:$0xf] %vm1997, %v1994
          %2004 = vst.msk [vmem:[%s333 + $0x18] sm:$0xf] %vm1997, %v1995
          %2005 = vst.msk [vmem:[%s333 + $0x1c] sm:$0xf] %vm1997, %v1996
        $region56: #{tpu_custom_call.1} parent=47 // pred_fallthru
          _
        %s2006 = sand.u32 %s213, 1
        %s2007 = scalar_lea.sflag [#allocation6], %s2006
        %s2008 = sand.u32 %s213, 1
        %s2009 = smul.addr %s2008, 32
        %s2010 = scalar_lea.vmem [#allocation5], %s2009
        // Predicated region
        $region57: #{tpu_custom_call.1} parent=47 // pred_check
          %p2011 = pneg %p223
        $region58: #{tpu_custom_call.1} parent=47 // pred_check_branch
          %2013 = sbr.rel (%p2011) target = $region60
        $region59: #{tpu_custom_call.1} parent=47 // pred_region
          %s2015 = ssub.s32 512, 512
          %2016 = vsyncadd %s2007, %s2015
          %s2017 = smul.addr %s25, 8
          %s2018 = smul.addr %s2017, 64
          %s2019 = scalar_lea.hbm %s7, %s2018
          %s2020 = sshll.u32 %s2010, 4
          %s2021 = int_to_ptr.vmem [resolvable:$true] %s2020
          %2026 = dma.vmem_to_hbm [thread:$0]  %s2021, 512, %s2019, %s2007, 64, 64, 4
        $region60: #{tpu_custom_call.1} parent=47 // pred_fallthru
          _
      $region48: #{tpu_custom_call.1} parent=5 // pred_fallthru
        _
      %p2027 = scmp.le.s32.totalorder 2, %s16
      // Predicated region
      $region61: #{tpu_custom_call.1} parent=5 // pred_check
        %p2028 = pneg %p2027
      $region62: #{tpu_custom_call.1} parent=5 // pred_check_branch
        %2030 = sbr.rel (%p2028) target = $region64
      $region63: #{tpu_custom_call.1} parent=5 // pred_region
        %s2031 = ssub.s32 %s16, 2
        // Predicated region
        $region65: #{tpu_custom_call.1} parent=63 // pred_check
          %p2032 = pneg %p229
        $region66: #{tpu_custom_call.1} parent=63 // pred_check_branch
          %2034 = sbr.rel (%p2032) target = $region68
        $region67: #{tpu_custom_call.1} parent=63 // pred_region
          %s2035 = sand.u32 %s214, 1
          %s2036 = scalar_lea.sflag [#allocation6], %s2035
          %s2037 = sand.u32 %s214, 1
          %s2038 = smul.addr %s2037, 32
          %s2039 = scalar_lea.vmem [#allocation5], %s2038
          %2040 = dma.done %s2036, 512
        $region68: #{tpu_custom_call.1} parent=63 // pred_fallthru
          _
      $region64: #{tpu_custom_call.1} parent=5 // pred_fallthru
        _
    $region6: #{tpu_custom_call.1} parent=1 // loop_footer
      %s20 = sadd.s32 1, %s16
    $region7: #{tpu_custom_call.1} parent=1 // loop_footer_branch
      %15 = sbr.rel target = $region3
    $region8: #{tpu_custom_call.1} parent=1 // loop_exit
      _
    %2041 = vsyncpa [#allocation6], 1
    %s2042 = scalar_lea.sflag [#allocation6], 1
    %2043 = vsyncpa %s2042, 1

</llo_original>
